<compile_context>
chip_gen: v6e
topology: v6e:2x2x1
jax: 0.10.0
libtpu: 0.0.40
codegen_flags: <defaults>
</compile_context>

<pallas_src>
import functools
import math

import jax
import jax.numpy as jnp
from jax.experimental import pallas as pl
from jax.experimental.pallas import tpu as pltpu

N_EMBD = 64
NUM_HEADS = 4
HEAD_SIZE = 16  # NUM_HEADS * HEAD_SIZE == N_EMBD, consistent with proj Linear(64, 64)


def _mha_kernel(x_ref, wqkv_ref, wp_ref, bp_ref, o_ref, *, B, T, H, D):
    """Single-invocation multi-head attention.

    x_ref:    (B*T, C)      flattened tokens
    wqkv_ref: (C, 3*C)      [Wq*scale | Wk | Wv], each (C, H*D), heads along columns
    wp_ref:   (C, C)        output projection (transposed, i.e. y = cat @ Wp + b)
    bp_ref:   (1, C)        output projection bias
    o_ref:    (B*T, C)
    """
    C = H * D
    xf = x_ref[...]                      # (B*T, C) f32
    wqkv = wqkv_ref[...]                 # (C, 3*C)
    wp = wp_ref[...]                     # (C, C)
    bias_row = bp_ref[...]               # (1, C)

    # One fused, lane-dense QKV projection (lanes = 3*C = 192 >= 128).
    qkv = jnp.dot(xf, wqkv, preferred_element_type=jnp.float32)   # (B*T, 3*C)

    # Additive causal mask shared by all batches/heads. Finite negative (not
    # -inf) so softmax stays NaN-free even if a row were ever fully masked.
    row = jax.lax.broadcasted_iota(jnp.int32, (T, T), 0)
    col = jax.lax.broadcasted_iota(jnp.int32, (T, T), 1)
    mask_bias = jnp.where(col <= row, jnp.float32(0.0), jnp.float32(-1e30))

    for b in range(B):                   # static unroll (B is tiny)
        r0 = b * T
        qkv_b = qkv[r0:r0 + T, :]        # (T, 3*C), sublane-aligned slice
        acc = jnp.zeros((T, C), jnp.float32)
        for h in range(H):               # static unroll (H = 4)
            # 1/sqrt(D) scale already folded into the Q columns of wqkv.
            q = qkv_b[:, h * D:(h + 1) * D]                       # (T, D)
            k = qkv_b[:, C + h * D:C + (h + 1) * D]               # (T, D)
            v = qkv_b[:, 2 * C + h * D:2 * C + (h + 1) * D]       # (T, D)

            s = jnp.dot(q, k.T, preferred_element_type=jnp.float32) + mask_bias
            m = jnp.max(s, axis=-1, keepdims=True)
            e = jnp.exp(s - m)
            denom = jnp.sum(e, axis=-1, keepdims=True)
            # Normalize with an EUP reciprocal instead of a divide.
            p = e * pl.reciprocal(denom, approx=True)

            out_h = jnp.dot(p, v, preferred_element_type=jnp.float32)  # (T, D)

            # Fold the head-concat into the output projection:
            # cat @ Wp == sum_h out_h @ Wp[h*D:(h+1)*D, :]
            acc = acc + jnp.dot(out_h, wp[h * D:(h + 1) * D, :],
                                preferred_element_type=jnp.float32)    # (T, C)

        o_ref[r0:r0 + T, :] = (acc + bias_row).astype(o_ref.dtype)


@jax.jit
def multihead_forward(x, wq, wk, wv, wp, bp):
    """x: (B, T, C) float32. wq/wk/wv: (H, C, D) (already transposed, x @ W).
    wp: (C, C) (transposed, cat @ wp). bp: (C,). Returns (B, T, C)."""
    B, T, C = x.shape
    H, _, D = wq.shape

    # Build the fused, lane-dense QKV weight (C, 3*H*D) and fold the softmax
    # scale into the Q part. All of this is one-time wrapper work (free).
    scale = 1.0 / math.sqrt(D)
    wq_f = jnp.transpose(wq, (1, 0, 2)).reshape(C, H * D) * scale
    wk_f = jnp.transpose(wk, (1, 0, 2)).reshape(C, H * D)
    wv_f = jnp.transpose(wv, (1, 0, 2)).reshape(C, H * D)
    w_qkv = jnp.concatenate([wq_f, wk_f, wv_f], axis=-1)     # (C, 3*C)

    x_flat = x.reshape(B * T, C)
    bp2 = bp.reshape(1, C)

    kernel = functools.partial(_mha_kernel, B=B, T=T, H=H, D=D)

    out_flat = pl.pallas_call(
        kernel,
        out_shape=jax.ShapeDtypeStruct((B * T, C), x.dtype),
        in_specs=[
            pl.BlockSpec(memory_space=pltpu.MemorySpace.VMEM),   # x (flattened)
            pl.BlockSpec(memory_space=pltpu.MemorySpace.VMEM),   # fused W_qkv
            pl.BlockSpec(memory_space=pltpu.MemorySpace.VMEM),   # W_proj^T
            pl.BlockSpec(memory_space=pltpu.MemorySpace.VMEM),   # bias
        ],
        out_specs=pl.BlockSpec(memory_space=pltpu.MemorySpace.VMEM),
    )(x_flat, w_qkv, wp, bp2)

    return out_flat.reshape(B, T, C)


def _reference(x, wq, wk, wv, wp, bp):
    """Plain-JAX reference mirroring the PyTorch forward (eval mode)."""
    B, T, C = x.shape
    D = wq.shape[-1]
    q = jnp.einsum('btc,hcd->bhtd', x, wq)
    k = jnp.einsum('btc,hcd->bhtd', x, wk)
    v = jnp.einsum('btc,hcd->bhtd', x, wv)
    scores = jnp.einsum('bhtd,bhsd->bhts', q, k) / math.sqrt(D)
    tril = jnp.tril(jnp.ones((T, T), dtype=bool))
    scores = jnp.where(tril[None, None], scores, -jnp.inf)
    p = jax.nn.softmax(scores, axis=-1)
    out = jnp.einsum('bhts,bhsd->bhtd', p, v)
    cat = jnp.transpose(out, (0, 2, 1, 3)).reshape(B, T, C)
    return cat @ wp + bp[None, None, :]


if __name__ == "__main__":
    key = jax.random.PRNGKey(0)
    B, T = 2, 8
    C, H, D = N_EMBD, NUM_HEADS, HEAD_SIZE

    keys = jax.random.split(key, 7)
    bound_head = 1.0 / math.sqrt(C)
    wq = jax.random.uniform(keys[0], (H, C, D), jnp.float32, -bound_head, bound_head)
    wk = jax.random.uniform(keys[1], (H, C, D), jnp.float32, -bound_head, bound_head)
    wv = jax.random.uniform(keys[2], (H, C, D), jnp.float32, -bound_head, bound_head)
    wp = jax.random.uniform(keys[3], (C, C), jnp.float32, -bound_head, bound_head)
    bp = jax.random.uniform(keys[4], (C,), jnp.float32, -bound_head, bound_head)

    x = jax.random.normal(keys[5], (B, T, C), jnp.float32)

    out = multihead_forward(x, wq, wk, wv, wp, bp)
    out = jax.block_until_ready(out)

    ref = _reference(x, wq, wk, wv, wp, bp)
    assert out.shape == (B, T, C)
    # Tolerance slightly looser than pure-f32 because the softmax denominator
    # uses the hardware's approximate EUP reciprocal (pl.reciprocal approx=True).
    assert jnp.allclose(out, ref, atol=1e-2, rtol=1e-2), "mismatch vs reference"

    print("KERNEL_OK")
</pallas_src>

<mosaic_0001>
module attributes {stable_mosaic.version = 11 : i64} {
  func.func @_mha_kernel(%arg0: memref<16x64xf32, #tpu.memory_space<vmem>>, %arg1: memref<64x192xf32, #tpu.memory_space<vmem>>, %arg2: memref<64x64xf32, #tpu.memory_space<vmem>>, %arg3: memref<1x64xf32, #tpu.memory_space<vmem>>, %arg4: memref<16x64xf32, #tpu.memory_space<vmem>>) attributes {dimension_semantics = [], scalar_prefetch = 0 : i64, scratch_operands = 0 : i64, tpu.core_type = #tpu.core_type<tc>} {
    %c0 = arith.constant 0 : index
    %c0_0 = arith.constant 0 : index
    %0 = vector.load %arg0[%c0, %c0_0] : memref<16x64xf32, #tpu.memory_space<vmem>>, vector<16x64xf32>
    %c0_1 = arith.constant 0 : index
    %c0_2 = arith.constant 0 : index
    %1 = vector.load %arg1[%c0_1, %c0_2] : memref<64x192xf32, #tpu.memory_space<vmem>>, vector<64x192xf32>
    %c0_3 = arith.constant 0 : index
    %c0_4 = arith.constant 0 : index
    %2 = vector.load %arg2[%c0_3, %c0_4] : memref<64x64xf32, #tpu.memory_space<vmem>>, vector<64x64xf32>
    %c0_5 = arith.constant 0 : index
    %c0_6 = arith.constant 0 : index
    %3 = vector.load %arg3[%c0_5, %c0_6] : memref<1x64xf32, #tpu.memory_space<vmem>>, vector<1x64xf32>
    %cst = arith.constant dense<0.000000e+00> : vector<16x192xf32>
    %4 = tpu.matmul %0, %1, %cst {dimension_numbers = #tpu.dot_dimension_numbers<[1], [0], [0], [1], [0, 0, 1, 1], [], []>} : vector<16x64xf32>, vector<64x192xf32>, vector<16x192xf32> -> vector<16x192xf32>
    %5 = tpu.iota {dimensions = array<i32: 0>} : vector<8x8xi32>
    %6 = tpu.iota {dimensions = array<i32: 1>} : vector<8x8xi32>
    %7 = arith.cmpi sle, %6, %5 : vector<8x8xi32>
    %cst_7 = arith.constant 0.000000e+00 : f32
    %cst_8 = arith.constant -1.000000e+30 : f32
    %8 = vector.broadcast %cst_7 : f32 to vector<8x8xf32>
    %9 = vector.broadcast %cst_8 : f32 to vector<8x8xf32>
    %10 = arith.select %7, %8, %9 : vector<8x8xi1>, vector<8x8xf32>
    %11 = vector.extract_strided_slice %4 {offsets = [0, 0], sizes = [8, 192], strides = [1, 1]} : vector<16x192xf32> to vector<8x192xf32>
    %cst_9 = arith.constant 0.000000e+00 : f32
    %12 = vector.broadcast %cst_9 : f32 to vector<8x64xf32>
    %13 = vector.extract_strided_slice %11 {offsets = [0, 0], sizes = [8, 16], strides = [1, 1]} : vector<8x192xf32> to vector<8x16xf32>
    %14 = vector.extract_strided_slice %11 {offsets = [0, 64], sizes = [8, 16], strides = [1, 1]} : vector<8x192xf32> to vector<8x16xf32>
    %15 = vector.extract_strided_slice %11 {offsets = [0, 128], sizes = [8, 16], strides = [1, 1]} : vector<8x192xf32> to vector<8x16xf32>
    %16 = tpu.transpose %14, [1, 0] : vector<8x16xf32> -> vector<16x8xf32>
    %cst_10 = arith.constant dense<0.000000e+00> : vector<8x8xf32>
    %17 = tpu.matmul %13, %16, %cst_10 {dimension_numbers = #tpu.dot_dimension_numbers<[1], [0], [0], [1], [0, 0, 1, 1], [], []>} : vector<8x16xf32>, vector<16x8xf32>, vector<8x8xf32> -> vector<8x8xf32>
    %18 = arith.addf %17, %10 : vector<8x8xf32>
    %cst_11 = arith.constant dense<0xFF800000> : vector<8xf32>
    %19 = vector.multi_reduction <maximumf>, %18, %cst_11 [1] : vector<8x8xf32> to vector<8xf32>
    %20 = vector.shape_cast %19 : vector<8xf32> to vector<8x1xf32>
    %21 = vector.broadcast %20 : vector<8x1xf32> to vector<8x8xf32>
    %22 = arith.subf %18, %21 : vector<8x8xf32>
    %23 = math.exp %22 : vector<8x8xf32>
    %cst_12 = arith.constant dense<0.000000e+00> : vector<8xf32>
    %24 = vector.multi_reduction <add>, %23, %cst_12 [1] : vector<8x8xf32> to vector<8xf32>
    %25 = vector.shape_cast %24 : vector<8xf32> to vector<8x1xf32>
    %26 = tpu.reciprocal %25 {approx = true} : vector<8x1xf32> -> vector<8x1xf32>
    %27 = vector.broadcast %26 : vector<8x1xf32> to vector<8x8xf32>
    %28 = arith.mulf %23, %27 : vector<8x8xf32>
    %cst_13 = arith.constant dense<0.000000e+00> : vector<8x16xf32>
    %29 = tpu.matmul %28, %15, %cst_13 {dimension_numbers = #tpu.dot_dimension_numbers<[1], [0], [0], [1], [0, 0, 1, 1], [], []>} : vector<8x8xf32>, vector<8x16xf32>, vector<8x16xf32> -> vector<8x16xf32>
    %30 = vector.extract_strided_slice %2 {offsets = [0, 0], sizes = [16, 64], strides = [1, 1]} : vector<64x64xf32> to vector<16x64xf32>
    %cst_14 = arith.constant dense<0.000000e+00> : vector<8x64xf32>
    %31 = tpu.matmul %29, %30, %cst_14 {dimension_numbers = #tpu.dot_dimension_numbers<[1], [0], [0], [1], [0, 0, 1, 1], [], []>} : vector<8x16xf32>, vector<16x64xf32>, vector<8x64xf32> -> vector<8x64xf32>
    %32 = arith.addf %12, %31 : vector<8x64xf32>
    %33 = vector.extract_strided_slice %11 {offsets = [0, 16], sizes = [8, 16], strides = [1, 1]} : vector<8x192xf32> to vector<8x16xf32>
    %34 = vector.extract_strided_slice %11 {offsets = [0, 80], sizes = [8, 16], strides = [1, 1]} : vector<8x192xf32> to vector<8x16xf32>
    %35 = vector.extract_strided_slice %11 {offsets = [0, 144], sizes = [8, 16], strides = [1, 1]} : vector<8x192xf32> to vector<8x16xf32>
    %36 = tpu.transpose %34, [1, 0] : vector<8x16xf32> -> vector<16x8xf32>
    %cst_15 = arith.constant dense<0.000000e+00> : vector<8x8xf32>
    %37 = tpu.matmul %33, %36, %cst_15 {dimension_numbers = #tpu.dot_dimension_numbers<[1], [0], [0], [1], [0, 0, 1, 1], [], []>} : vector<8x16xf32>, vector<16x8xf32>, vector<8x8xf32> -> vector<8x8xf32>
    %38 = arith.addf %37, %10 : vector<8x8xf32>
    %cst_16 = arith.constant dense<0xFF800000> : vector<8xf32>
    %39 = vector.multi_reduction <maximumf>, %38, %cst_16 [1] : vector<8x8xf32> to vector<8xf32>
    %40 = vector.shape_cast %39 : vector<8xf32> to vector<8x1xf32>
    %41 = vector.broadcast %40 : vector<8x1xf32> to vector<8x8xf32>
    %42 = arith.subf %38, %41 : vector<8x8xf32>
    %43 = math.exp %42 : vector<8x8xf32>
    %cst_17 = arith.constant dense<0.000000e+00> : vector<8xf32>
    %44 = vector.multi_reduction <add>, %43, %cst_17 [1] : vector<8x8xf32> to vector<8xf32>
    %45 = vector.shape_cast %44 : vector<8xf32> to vector<8x1xf32>
    %46 = tpu.reciprocal %45 {approx = true} : vector<8x1xf32> -> vector<8x1xf32>
    %47 = vector.broadcast %46 : vector<8x1xf32> to vector<8x8xf32>
    %48 = arith.mulf %43, %47 : vector<8x8xf32>
    %cst_18 = arith.constant dense<0.000000e+00> : vector<8x16xf32>
    %49 = tpu.matmul %48, %35, %cst_18 {dimension_numbers = #tpu.dot_dimension_numbers<[1], [0], [0], [1], [0, 0, 1, 1], [], []>} : vector<8x8xf32>, vector<8x16xf32>, vector<8x16xf32> -> vector<8x16xf32>
    %50 = vector.extract_strided_slice %2 {offsets = [16, 0], sizes = [16, 64], strides = [1, 1]} : vector<64x64xf32> to vector<16x64xf32>
    %cst_19 = arith.constant dense<0.000000e+00> : vector<8x64xf32>
    %51 = tpu.matmul %49, %50, %cst_19 {dimension_numbers = #tpu.dot_dimension_numbers<[1], [0], [0], [1], [0, 0, 1, 1], [], []>} : vector<8x16xf32>, vector<16x64xf32>, vector<8x64xf32> -> vector<8x64xf32>
    %52 = arith.addf %32, %51 : vector<8x64xf32>
    %53 = vector.extract_strided_slice %11 {offsets = [0, 32], sizes = [8, 16], strides = [1, 1]} : vector<8x192xf32> to vector<8x16xf32>
    %54 = vector.extract_strided_slice %11 {offsets = [0, 96], sizes = [8, 16], strides = [1, 1]} : vector<8x192xf32> to vector<8x16xf32>
    %55 = vector.extract_strided_slice %11 {offsets = [0, 160], sizes = [8, 16], strides = [1, 1]} : vector<8x192xf32> to vector<8x16xf32>
    %56 = tpu.transpose %54, [1, 0] : vector<8x16xf32> -> vector<16x8xf32>
    %cst_20 = arith.constant dense<0.000000e+00> : vector<8x8xf32>
    %57 = tpu.matmul %53, %56, %cst_20 {dimension_numbers = #tpu.dot_dimension_numbers<[1], [0], [0], [1], [0, 0, 1, 1], [], []>} : vector<8x16xf32>, vector<16x8xf32>, vector<8x8xf32> -> vector<8x8xf32>
    %58 = arith.addf %57, %10 : vector<8x8xf32>
    %cst_21 = arith.constant dense<0xFF800000> : vector<8xf32>
    %59 = vector.multi_reduction <maximumf>, %58, %cst_21 [1] : vector<8x8xf32> to vector<8xf32>
    %60 = vector.shape_cast %59 : vector<8xf32> to vector<8x1xf32>
    %61 = vector.broadcast %60 : vector<8x1xf32> to vector<8x8xf32>
    %62 = arith.subf %58, %61 : vector<8x8xf32>
    %63 = math.exp %62 : vector<8x8xf32>
    %cst_22 = arith.constant dense<0.000000e+00> : vector<8xf32>
    %64 = vector.multi_reduction <add>, %63, %cst_22 [1] : vector<8x8xf32> to vector<8xf32>
    %65 = vector.shape_cast %64 : vector<8xf32> to vector<8x1xf32>
    %66 = tpu.reciprocal %65 {approx = true} : vector<8x1xf32> -> vector<8x1xf32>
    %67 = vector.broadcast %66 : vector<8x1xf32> to vector<8x8xf32>
    %68 = arith.mulf %63, %67 : vector<8x8xf32>
    %cst_23 = arith.constant dense<0.000000e+00> : vector<8x16xf32>
    %69 = tpu.matmul %68, %55, %cst_23 {dimension_numbers = #tpu.dot_dimension_numbers<[1], [0], [0], [1], [0, 0, 1, 1], [], []>} : vector<8x8xf32>, vector<8x16xf32>, vector<8x16xf32> -> vector<8x16xf32>
    %70 = vector.extract_strided_slice %2 {offsets = [32, 0], sizes = [16, 64], strides = [1, 1]} : vector<64x64xf32> to vector<16x64xf32>
    %cst_24 = arith.constant dense<0.000000e+00> : vector<8x64xf32>
    %71 = tpu.matmul %69, %70, %cst_24 {dimension_numbers = #tpu.dot_dimension_numbers<[1], [0], [0], [1], [0, 0, 1, 1], [], []>} : vector<8x16xf32>, vector<16x64xf32>, vector<8x64xf32> -> vector<8x64xf32>
    %72 = arith.addf %52, %71 : vector<8x64xf32>
    %73 = vector.extract_strided_slice %11 {offsets = [0, 48], sizes = [8, 16], strides = [1, 1]} : vector<8x192xf32> to vector<8x16xf32>
    %74 = vector.extract_strided_slice %11 {offsets = [0, 112], sizes = [8, 16], strides = [1, 1]} : vector<8x192xf32> to vector<8x16xf32>
    %75 = vector.extract_strided_slice %11 {offsets = [0, 176], sizes = [8, 16], strides = [1, 1]} : vector<8x192xf32> to vector<8x16xf32>
    %76 = tpu.transpose %74, [1, 0] : vector<8x16xf32> -> vector<16x8xf32>
    %cst_25 = arith.constant dense<0.000000e+00> : vector<8x8xf32>
    %77 = tpu.matmul %73, %76, %cst_25 {dimension_numbers = #tpu.dot_dimension_numbers<[1], [0], [0], [1], [0, 0, 1, 1], [], []>} : vector<8x16xf32>, vector<16x8xf32>, vector<8x8xf32> -> vector<8x8xf32>
    %78 = arith.addf %77, %10 : vector<8x8xf32>
    %cst_26 = arith.constant dense<0xFF800000> : vector<8xf32>
    %79 = vector.multi_reduction <maximumf>, %78, %cst_26 [1] : vector<8x8xf32> to vector<8xf32>
    %80 = vector.shape_cast %79 : vector<8xf32> to vector<8x1xf32>
    %81 = vector.broadcast %80 : vector<8x1xf32> to vector<8x8xf32>
    %82 = arith.subf %78, %81 : vector<8x8xf32>
    %83 = math.exp %82 : vector<8x8xf32>
    %cst_27 = arith.constant dense<0.000000e+00> : vector<8xf32>
    %84 = vector.multi_reduction <add>, %83, %cst_27 [1] : vector<8x8xf32> to vector<8xf32>
    %85 = vector.shape_cast %84 : vector<8xf32> to vector<8x1xf32>
    %86 = tpu.reciprocal %85 {approx = true} : vector<8x1xf32> -> vector<8x1xf32>
    %87 = vector.broadcast %86 : vector<8x1xf32> to vector<8x8xf32>
    %88 = arith.mulf %83, %87 : vector<8x8xf32>
    %cst_28 = arith.constant dense<0.000000e+00> : vector<8x16xf32>
    %89 = tpu.matmul %88, %75, %cst_28 {dimension_numbers = #tpu.dot_dimension_numbers<[1], [0], [0], [1], [0, 0, 1, 1], [], []>} : vector<8x8xf32>, vector<8x16xf32>, vector<8x16xf32> -> vector<8x16xf32>
    %90 = vector.extract_strided_slice %2 {offsets = [48, 0], sizes = [16, 64], strides = [1, 1]} : vector<64x64xf32> to vector<16x64xf32>
    %cst_29 = arith.constant dense<0.000000e+00> : vector<8x64xf32>
    %91 = tpu.matmul %89, %90, %cst_29 {dimension_numbers = #tpu.dot_dimension_numbers<[1], [0], [0], [1], [0, 0, 1, 1], [], []>} : vector<8x16xf32>, vector<16x64xf32>, vector<8x64xf32> -> vector<8x64xf32>
    %92 = arith.addf %72, %91 : vector<8x64xf32>
    %93 = vector.broadcast %3 : vector<1x64xf32> to vector<8x64xf32>
    %94 = arith.addf %92, %93 : vector<8x64xf32>
    %c0_30 = arith.constant 0 : index
    %c0_31 = arith.constant 0 : index
    %95 = vector.load %arg4[%c0_30, %c0_31] : memref<16x64xf32, #tpu.memory_space<vmem>>, vector<8x64xf32>
    tpu.vector_store %arg4[%c0_30, %c0_31], %94 {strides = array<i32>} : memref<16x64xf32, #tpu.memory_space<vmem>>, vector<8x64xf32>,
    %96 = vector.extract_strided_slice %4 {offsets = [8, 0], sizes = [8, 192], strides = [1, 1]} : vector<16x192xf32> to vector<8x192xf32>
    %cst_32 = arith.constant 0.000000e+00 : f32
    %97 = vector.broadcast %cst_32 : f32 to vector<8x64xf32>
    %98 = vector.extract_strided_slice %96 {offsets = [0, 0], sizes = [8, 16], strides = [1, 1]} : vector<8x192xf32> to vector<8x16xf32>
    %99 = vector.extract_strided_slice %96 {offsets = [0, 64], sizes = [8, 16], strides = [1, 1]} : vector<8x192xf32> to vector<8x16xf32>
    %100 = vector.extract_strided_slice %96 {offsets = [0, 128], sizes = [8, 16], strides = [1, 1]} : vector<8x192xf32> to vector<8x16xf32>
    %101 = tpu.transpose %99, [1, 0] : vector<8x16xf32> -> vector<16x8xf32>
    %cst_33 = arith.constant dense<0.000000e+00> : vector<8x8xf32>
    %102 = tpu.matmul %98, %101, %cst_33 {dimension_numbers = #tpu.dot_dimension_numbers<[1], [0], [0], [1], [0, 0, 1, 1], [], []>} : vector<8x16xf32>, vector<16x8xf32>, vector<8x8xf32> -> vector<8x8xf32>
    %103 = arith.addf %102, %10 : vector<8x8xf32>
    %cst_34 = arith.constant dense<0xFF800000> : vector<8xf32>
    %104 = vector.multi_reduction <maximumf>, %103, %cst_34 [1] : vector<8x8xf32> to vector<8xf32>
    %105 = vector.shape_cast %104 : vector<8xf32> to vector<8x1xf32>
    %106 = vector.broadcast %105 : vector<8x1xf32> to vector<8x8xf32>
    %107 = arith.subf %103, %106 : vector<8x8xf32>
    %108 = math.exp %107 : vector<8x8xf32>
    %cst_35 = arith.constant dense<0.000000e+00> : vector<8xf32>
    %109 = vector.multi_reduction <add>, %108, %cst_35 [1] : vector<8x8xf32> to vector<8xf32>
    %110 = vector.shape_cast %109 : vector<8xf32> to vector<8x1xf32>
    %111 = tpu.reciprocal %110 {approx = true} : vector<8x1xf32> -> vector<8x1xf32>
    %112 = vector.broadcast %111 : vector<8x1xf32> to vector<8x8xf32>
    %113 = arith.mulf %108, %112 : vector<8x8xf32>
    %cst_36 = arith.constant dense<0.000000e+00> : vector<8x16xf32>
    %114 = tpu.matmul %113, %100, %cst_36 {dimension_numbers = #tpu.dot_dimension_numbers<[1], [0], [0], [1], [0, 0, 1, 1], [], []>} : vector<8x8xf32>, vector<8x16xf32>, vector<8x16xf32> -> vector<8x16xf32>
    %115 = vector.extract_strided_slice %2 {offsets = [0, 0], sizes = [16, 64], strides = [1, 1]} : vector<64x64xf32> to vector<16x64xf32>
    %cst_37 = arith.constant dense<0.000000e+00> : vector<8x64xf32>
    %116 = tpu.matmul %114, %115, %cst_37 {dimension_numbers = #tpu.dot_dimension_numbers<[1], [0], [0], [1], [0, 0, 1, 1], [], []>} : vector<8x16xf32>, vector<16x64xf32>, vector<8x64xf32> -> vector<8x64xf32>
    %117 = arith.addf %97, %116 : vector<8x64xf32>
    %118 = vector.extract_strided_slice %96 {offsets = [0, 16], sizes = [8, 16], strides = [1, 1]} : vector<8x192xf32> to vector<8x16xf32>
    %119 = vector.extract_strided_slice %96 {offsets = [0, 80], sizes = [8, 16], strides = [1, 1]} : vector<8x192xf32> to vector<8x16xf32>
    %120 = vector.extract_strided_slice %96 {offsets = [0, 144], sizes = [8, 16], strides = [1, 1]} : vector<8x192xf32> to vector<8x16xf32>
    %121 = tpu.transpose %119, [1, 0] : vector<8x16xf32> -> vector<16x8xf32>
    %cst_38 = arith.constant dense<0.000000e+00> : vector<8x8xf32>
    %122 = tpu.matmul %118, %121, %cst_38 {dimension_numbers = #tpu.dot_dimension_numbers<[1], [0], [0], [1], [0, 0, 1, 1], [], []>} : vector<8x16xf32>, vector<16x8xf32>, vector<8x8xf32> -> vector<8x8xf32>
    %123 = arith.addf %122, %10 : vector<8x8xf32>
    %cst_39 = arith.constant dense<0xFF800000> : vector<8xf32>
    %124 = vector.multi_reduction <maximumf>, %123, %cst_39 [1] : vector<8x8xf32> to vector<8xf32>
    %125 = vector.shape_cast %124 : vector<8xf32> to vector<8x1xf32>
    %126 = vector.broadcast %125 : vector<8x1xf32> to vector<8x8xf32>
    %127 = arith.subf %123, %126 : vector<8x8xf32>
    %128 = math.exp %127 : vector<8x8xf32>
    %cst_40 = arith.constant dense<0.000000e+00> : vector<8xf32>
    %129 = vector.multi_reduction <add>, %128, %cst_40 [1] : vector<8x8xf32> to vector<8xf32>
    %130 = vector.shape_cast %129 : vector<8xf32> to vector<8x1xf32>
    %131 = tpu.reciprocal %130 {approx = true} : vector<8x1xf32> -> vector<8x1xf32>
    %132 = vector.broadcast %131 : vector<8x1xf32> to vector<8x8xf32>
    %133 = arith.mulf %128, %132 : vector<8x8xf32>
    %cst_41 = arith.constant dense<0.000000e+00> : vector<8x16xf32>
    %134 = tpu.matmul %133, %120, %cst_41 {dimension_numbers = #tpu.dot_dimension_numbers<[1], [0], [0], [1], [0, 0, 1, 1], [], []>} : vector<8x8xf32>, vector<8x16xf32>, vector<8x16xf32> -> vector<8x16xf32>
    %135 = vector.extract_strided_slice %2 {offsets = [16, 0], sizes = [16, 64], strides = [1, 1]} : vector<64x64xf32> to vector<16x64xf32>
    %cst_42 = arith.constant dense<0.000000e+00> : vector<8x64xf32>
    %136 = tpu.matmul %134, %135, %cst_42 {dimension_numbers = #tpu.dot_dimension_numbers<[1], [0], [0], [1], [0, 0, 1, 1], [], []>} : vector<8x16xf32>, vector<16x64xf32>, vector<8x64xf32> -> vector<8x64xf32>
    %137 = arith.addf %117, %136 : vector<8x64xf32>
    %138 = vector.extract_strided_slice %96 {offsets = [0, 32], sizes = [8, 16], strides = [1, 1]} : vector<8x192xf32> to vector<8x16xf32>
    %139 = vector.extract_strided_slice %96 {offsets = [0, 96], sizes = [8, 16], strides = [1, 1]} : vector<8x192xf32> to vector<8x16xf32>
    %140 = vector.extract_strided_slice %96 {offsets = [0, 160], sizes = [8, 16], strides = [1, 1]} : vector<8x192xf32> to vector<8x16xf32>
    %141 = tpu.transpose %139, [1, 0] : vector<8x16xf32> -> vector<16x8xf32>
    %cst_43 = arith.constant dense<0.000000e+00> : vector<8x8xf32>
    %142 = tpu.matmul %138, %141, %cst_43 {dimension_numbers = #tpu.dot_dimension_numbers<[1], [0], [0], [1], [0, 0, 1, 1], [], []>} : vector<8x16xf32>, vector<16x8xf32>, vector<8x8xf32> -> vector<8x8xf32>
    %143 = arith.addf %142, %10 : vector<8x8xf32>
    %cst_44 = arith.constant dense<0xFF800000> : vector<8xf32>
    %144 = vector.multi_reduction <maximumf>, %143, %cst_44 [1] : vector<8x8xf32> to vector<8xf32>
    %145 = vector.shape_cast %144 : vector<8xf32> to vector<8x1xf32>
    %146 = vector.broadcast %145 : vector<8x1xf32> to vector<8x8xf32>
    %147 = arith.subf %143, %146 : vector<8x8xf32>
    %148 = math.exp %147 : vector<8x8xf32>
    %cst_45 = arith.constant dense<0.000000e+00> : vector<8xf32>
    %149 = vector.multi_reduction <add>, %148, %cst_45 [1] : vector<8x8xf32> to vector<8xf32>
    %150 = vector.shape_cast %149 : vector<8xf32> to vector<8x1xf32>
    %151 = tpu.reciprocal %150 {approx = true} : vector<8x1xf32> -> vector<8x1xf32>
    %152 = vector.broadcast %151 : vector<8x1xf32> to vector<8x8xf32>
    %153 = arith.mulf %148, %152 : vector<8x8xf32>
    %cst_46 = arith.constant dense<0.000000e+00> : vector<8x16xf32>
    %154 = tpu.matmul %153, %140, %cst_46 {dimension_numbers = #tpu.dot_dimension_numbers<[1], [0], [0], [1], [0, 0, 1, 1], [], []>} : vector<8x8xf32>, vector<8x16xf32>, vector<8x16xf32> -> vector<8x16xf32>
    %155 = vector.extract_strided_slice %2 {offsets = [32, 0], sizes = [16, 64], strides = [1, 1]} : vector<64x64xf32> to vector<16x64xf32>
    %cst_47 = arith.constant dense<0.000000e+00> : vector<8x64xf32>
    %156 = tpu.matmul %154, %155, %cst_47 {dimension_numbers = #tpu.dot_dimension_numbers<[1], [0], [0], [1], [0, 0, 1, 1], [], []>} : vector<8x16xf32>, vector<16x64xf32>, vector<8x64xf32> -> vector<8x64xf32>
    %157 = arith.addf %137, %156 : vector<8x64xf32>
    %158 = vector.extract_strided_slice %96 {offsets = [0, 48], sizes = [8, 16], strides = [1, 1]} : vector<8x192xf32> to vector<8x16xf32>
    %159 = vector.extract_strided_slice %96 {offsets = [0, 112], sizes = [8, 16], strides = [1, 1]} : vector<8x192xf32> to vector<8x16xf32>
    %160 = vector.extract_strided_slice %96 {offsets = [0, 176], sizes = [8, 16], strides = [1, 1]} : vector<8x192xf32> to vector<8x16xf32>
    %161 = tpu.transpose %159, [1, 0] : vector<8x16xf32> -> vector<16x8xf32>
    %cst_48 = arith.constant dense<0.000000e+00> : vector<8x8xf32>
    %162 = tpu.matmul %158, %161, %cst_48 {dimension_numbers = #tpu.dot_dimension_numbers<[1], [0], [0], [1], [0, 0, 1, 1], [], []>} : vector<8x16xf32>, vector<16x8xf32>, vector<8x8xf32> -> vector<8x8xf32>
    %163 = arith.addf %162, %10 : vector<8x8xf32>
    %cst_49 = arith.constant dense<0xFF800000> : vector<8xf32>
    %164 = vector.multi_reduction <maximumf>, %163, %cst_49 [1] : vector<8x8xf32> to vector<8xf32>
    %165 = vector.shape_cast %164 : vector<8xf32> to vector<8x1xf32>
    %166 = vector.broadcast %165 : vector<8x1xf32> to vector<8x8xf32>
    %167 = arith.subf %163, %166 : vector<8x8xf32>
    %168 = math.exp %167 : vector<8x8xf32>
    %cst_50 = arith.constant dense<0.000000e+00> : vector<8xf32>
    %169 = vector.multi_reduction <add>, %168, %cst_50 [1] : vector<8x8xf32> to vector<8xf32>
    %170 = vector.shape_cast %169 : vector<8xf32> to vector<8x1xf32>
    %171 = tpu.reciprocal %170 {approx = true} : vector<8x1xf32> -> vector<8x1xf32>
    %172 = vector.broadcast %171 : vector<8x1xf32> to vector<8x8xf32>
    %173 = arith.mulf %168, %172 : vector<8x8xf32>
    %cst_51 = arith.constant dense<0.000000e+00> : vector<8x16xf32>
    %174 = tpu.matmul %173, %160, %cst_51 {dimension_numbers = #tpu.dot_dimension_numbers<[1], [0], [0], [1], [0, 0, 1, 1], [], []>} : vector<8x8xf32>, vector<8x16xf32>, vector<8x16xf32> -> vector<8x16xf32>
    %175 = vector.extract_strided_slice %2 {offsets = [48, 0], sizes = [16, 64], strides = [1, 1]} : vector<64x64xf32> to vector<16x64xf32>
    %cst_52 = arith.constant dense<0.000000e+00> : vector<8x64xf32>
    %176 = tpu.matmul %174, %175, %cst_52 {dimension_numbers = #tpu.dot_dimension_numbers<[1], [0], [0], [1], [0, 0, 1, 1], [], []>} : vector<8x16xf32>, vector<16x64xf32>, vector<8x64xf32> -> vector<8x64xf32>
    %177 = arith.addf %157, %176 : vector<8x64xf32>
    %178 = vector.broadcast %3 : vector<1x64xf32> to vector<8x64xf32>
    %179 = arith.addf %177, %178 : vector<8x64xf32>
    %c8 = arith.constant 8 : index
    %c0_53 = arith.constant 0 : index
    %180 = vector.load %arg4[%c8, %c0_53] : memref<16x64xf32, #tpu.memory_space<vmem>>, vector<8x64xf32>
    tpu.vector_store %arg4[%c8, %c0_53], %179 {strides = array<i32>} : memref<16x64xf32, #tpu.memory_space<vmem>>, vector<8x64xf32>,
    return
  }
}

</mosaic_0001>

<llo_original>
// kernel: multihead_forward.1
$region0: #{multihead_forward.1}
  #allocation0 [shape = 'u32[]', space=smem, size = 0x4, offset = 0x4, fixed_abs, tag = 'smem constant byte address 0x4 - core index']
  #allocation1 [shape = 'u32[144,128]{1,0:T(1,128)}', space=vmem, size = 0x12000, scoped, tag = 'internal scratch']
  %s0 = inlined_call_operand.vmem [shape: f32[16,64], index: 0, kind: input, shape index: {}]
  %s1 = inlined_call_operand.vmem [shape: f32[64,192], index: 1, kind: input, shape index: {}]
  %s2 = inlined_call_operand.vmem [shape: f32[64,64], index: 2, kind: input, shape index: {}]
  %s3 = inlined_call_operand.vmem [shape: f32[1,64], index: 3, kind: input, shape index: {}]
  %s4 = inlined_call_operand.hbm [shape: f32[16,64], index: 4, kind: output, shape index: {}]
  %s5 = sld [smem:[#allocation0]]
  $region26: #{multihead_forward.1} parent=0
    _
  %s7 = ssub.s32 1, %s5
  %s8 = scalar_select 0, %s7, %s5
  $region1: #{multihead_forward.1} parent=0
    #allocation2 [shape = 'u8[8192]{0}', space=vmem, size = 0x2000, scoped, tag = 'output window, operand 0, single buffered']
    #allocation3 [shape = 's32[1]{0}', space=sflag, size = 0x4, scoped, tag = 'scoped memory for multihead_forward.1']
    %9 = vsyncpa [#allocation3], 0
    // Predicated region
    $region2: #{multihead_forward.1} parent=1 // pred_check
      _
    $region3: #{multihead_forward.1} parent=1 // pred_check_branch
      %11 = sbr.rel (0) target = $region5
    $region4: #{multihead_forward.1} parent=1 // pred_region
      _
    $region5: #{multihead_forward.1} parent=1 // pred_fallthru
      _
    // Predicated region
    $region6: #{multihead_forward.1} parent=1 // pred_check
      _
    $region7: #{multihead_forward.1} parent=1 // pred_check_branch
      %13 = sbr.rel (0) target = $region9
    $region8: #{multihead_forward.1} parent=1 // pred_region
      _
    $region9: #{multihead_forward.1} parent=1 // pred_fallthru
      _
    // Predicated region
    $region10: #{multihead_forward.1} parent=1 // pred_check
      _
    $region11: #{multihead_forward.1} parent=1 // pred_check_branch
      %15 = sbr.rel (0) target = $region13
    $region12: #{multihead_forward.1} parent=1 // pred_region
      _
    $region13: #{multihead_forward.1} parent=1 // pred_fallthru
      _
    // Predicated region
    $region14: #{multihead_forward.1} parent=1 // pred_check
      _
    $region15: #{multihead_forward.1} parent=1 // pred_check_branch
      %17 = sbr.rel (0) target = $region17
    $region16: #{multihead_forward.1} parent=1 // pred_region
      _
    $region17: #{multihead_forward.1} parent=1 // pred_fallthru
      _
    %v18 = vld [vmem:[%s0] sm:$0xff]
    %v19 = vld [vmem:[%s0 + $0x8] sm:$0xff]
    %v20 = vld [vmem:[%s1] sm:$0xff]
    %v21 = vld [vmem:[%s1 + $0x8] sm:$0xff]
    %v22 = vld [vmem:[%s1 + $0x10] sm:$0xff]
    %v23 = vld [vmem:[%s1 + $0x18] sm:$0xff]
    %v24 = vld [vmem:[%s1 + $0x20] sm:$0xff]
    %v25 = vld [vmem:[%s1 + $0x28] sm:$0xff]
    %v26 = vld [vmem:[%s1 + $0x30] sm:$0xff]
    %v27 = vld [vmem:[%s1 + $0x38] sm:$0xff]
    %v28 = vld [vmem:[%s1 + $0x40] sm:$0xff]
    %v29 = vld [vmem:[%s1 + $0x48] sm:$0xff]
    %v30 = vld [vmem:[%s1 + $0x50] sm:$0xff]
    %v31 = vld [vmem:[%s1 + $0x58] sm:$0xff]
    %v32 = vld [vmem:[%s1 + $0x60] sm:$0xff]
    %v33 = vld [vmem:[%s1 + $0x68] sm:$0xff]
    %v34 = vld [vmem:[%s1 + $0x70] sm:$0xff]
    %v35 = vld [vmem:[%s1 + $0x78] sm:$0xff]
    %v36 = vld [vmem:[%s2] sm:$0xff]
    %v37 = vld [vmem:[%s2 + $0x8] sm:$0xff]
    %v38 = vld [vmem:[%s2 + $0x10] sm:$0xff]
    %v39 = vld [vmem:[%s2 + $0x18] sm:$0xff]
    %v40 = vld [vmem:[%s2 + $0x20] sm:$0xff]
    %v41 = vld [vmem:[%s2 + $0x28] sm:$0xff]
    %v42 = vld [vmem:[%s2 + $0x30] sm:$0xff]
    %v43 = vld [vmem:[%s2 + $0x38] sm:$0xff]
    %v44 = vld [vmem:[%s3] sm:$0x1]
    %vm45 = vcmask 523264
    %v47 = vsel %vm45, %v18, 0
    %v50 = vsel %vm45, %v19, 0
    %52 = vmatprep.subr.mxu0 0.0
    %53 = vmatpush1.msra.mxu0 0.0
    %54 = vmatprep.subr.mxu0 0.0
    %55 = vmatpush1.msra.mxu0 0.0
    %56 = vmatprep.subr.mxu0 0.0
    %57 = vmatpush1.msra.mxu0 0.0
    %58 = vmatprep.subr.mxu0 0.0
    %59 = vmatpush1.msra.mxu0 0.0
    %60 = vmatprep.subr.mxu0 0.0
    %61 = vmatpush1.msra.mxu0 0.0
    %62 = vmatprep.subr.mxu0 0.0
    %63 = vmatpush1.msra.mxu0 0.0
    %64 = vmatprep.subr.mxu0 0.0
    %65 = vmatpush1.msra.mxu0 0.0
    %66 = vmatprep.subr.mxu0 0.0
    %67 = vmatpush1.msra.mxu0 0.0
    %68 = vmatprep.subr.mxu0 %v35
    %69 = vmatpush1.msra.mxu0 %v34
    %70 = vmatprep.subr.mxu0 %v33
    %71 = vmatpush1.msra.mxu0 %v32
    %72 = vmatprep.subr.mxu0 %v31
    %73 = vmatpush1.msra.mxu0 %v30
    %74 = vmatprep.subr.mxu0 %v29
    %75 = vmatpush1.msra.mxu0 %v28
    %76 = vmatprep.subr.mxu0 %v27
    %77 = vmatpush1.msra.mxu0 %v26
    %78 = vmatprep.subr.mxu0 %v25
    %79 = vmatpush1.msra.mxu0 %v24
    %80 = vmatprep.subr.mxu0 %v23
    %81 = vmatpush1.msra.mxu0 %v22
    %82 = vmatprep.subr.mxu0 %v21
    %83 = vmatpush1.msra.mxu0 %v20
    %84 = vmatprep.subr.mxu0 0.0
    %85 = vmatpush2.msra.mxu0 0.0
    %86 = vmatprep.subr.mxu0 0.0
    %87 = vmatpush2.msra.mxu0 0.0
    %88 = vmatprep.subr.mxu0 0.0
    %89 = vmatpush2.msra.mxu0 0.0
    %90 = vmatprep.subr.mxu0 0.0
    %91 = vmatpush2.msra.mxu0 0.0
    %92 = vmatprep.subr.mxu0 0.0
    %93 = vmatpush2.msra.mxu0 0.0
    %94 = vmatprep.subr.mxu0 0.0
    %95 = vmatpush2.msra.mxu0 0.0
    %96 = vmatprep.subr.mxu0 0.0
    %97 = vmatpush2.msra.mxu0 0.0
    %98 = vmatprep.subr.mxu0 0.0
    %99 = vmatpush2.msra.mxu0 0.0
    %100 = vmatprep.subr.mxu0 0.0
    %101 = vmatpush2.msra.mxu0 0.0
    %102 = vmatprep.subr.mxu0 0.0
    %103 = vmatpush2.msra.mxu0 0.0
    %104 = vmatprep.subr.mxu0 0.0
    %105 = vmatpush2.msra.mxu0 0.0
    %106 = vmatprep.subr.mxu0 0.0
    %107 = vmatpush2.msra.mxu0 0.0
    %108 = vmatprep.subr.mxu0 0.0
    %109 = vmatpush2.msra.mxu0 0.0
    %110 = vmatprep.subr.mxu0 0.0
    %111 = vmatpush2.msra.mxu0 0.0
    %112 = vmatprep.subr.mxu0 0.0
    %113 = vmatpush2.msra.mxu0 0.0
    %114 = vmatprep.subr.mxu0 0.0
    %115 = vmatpush2.msra.mxu0 0.0
    %116 = vmatprep.mubr.f32.mxu0 0.0
    %117 = vmatmul.mubr.f32.gmra.mxu0 %v47
    %v118 = vpop.f32.mrf.mxu0
    %v119 = vadd.f32 0.0, %v118
    %v120 = vpop.f32.mrf.mxu0
    %v121 = vadd.f32 0.0, %v120
    %122 = vmatprep.mubr.f32.mxu0 0.0
    %123 = vmatmul.mubr.f32.gmra.mxu0 %v50
    %v124 = vpop.f32.mrf.mxu0
    %v125 = vadd.f32 0.0, %v124
    %v126 = vpop.f32.mrf.mxu0
    %v127 = vadd.f32 0.0, %v126
    %128 = vdwg.mxu0
    %v129 = vlaneseq
    %v130 = vshrl.u32 %v129, 7
    %v131 = vlaneseq
    %v132 = vand.u32 %v131, 127
    %vm133 = vcmp.le.s32.totalorder %v132, %v130
    %v134 = vsel %vm133, 0.0, -1e+30
    %136 = vrot.lane.b32.xlu0 %v119, 64
    %v137 = vpop.permute.xlu0 %136
    %vm138 = vcmask 130048
    %v139 = vsel %vm138, %v119, 0
    %v141 = vsel %vm138, %v137, 0
    %143 = vmatprep.subr.mxu0 0.0
    %144 = vmatpush1.xpose.msra.mxu0 0.0
    %145 = vmatprep.subr.mxu0 0.0
    %146 = vmatpush1.xpose.msra.mxu0 0.0
    %147 = vmatprep.subr.mxu0 0.0
    %148 = vmatpush1.xpose.msra.mxu0 0.0
    %149 = vmatprep.subr.mxu0 0.0
    %150 = vmatpush1.xpose.msra.mxu0 0.0
    %151 = vmatprep.subr.mxu0 0.0
    %152 = vmatpush1.xpose.msra.mxu0 0.0
    %153 = vmatprep.subr.mxu0 0.0
    %154 = vmatpush1.xpose.msra.mxu0 0.0
    %155 = vmatprep.subr.mxu0 0.0
    %156 = vmatpush1.xpose.msra.mxu0 0.0
    %157 = vmatprep.subr.mxu0 0.0
    %158 = vmatpush1.xpose.msra.mxu0 0.0
    %159 = vmatprep.subr.mxu0 0.0
    %160 = vmatpush1.xpose.msra.mxu0 0.0
    %161 = vmatprep.subr.mxu0 0.0
    %162 = vmatpush1.xpose.msra.mxu0 0.0
    %163 = vmatprep.subr.mxu0 0.0
    %164 = vmatpush1.xpose.msra.mxu0 0.0
    %165 = vmatprep.subr.mxu0 0.0
    %166 = vmatpush1.xpose.msra.mxu0 0.0
    %167 = vmatprep.subr.mxu0 0.0
    %168 = vmatpush1.xpose.msra.mxu0 0.0
    %169 = vmatprep.subr.mxu0 0.0
    %170 = vmatpush1.xpose.msra.mxu0 0.0
    %171 = vmatprep.subr.mxu0 0.0
    %172 = vmatpush1.xpose.msra.mxu0 0.0
    %173 = vmatprep.subr.mxu0 0.0
    %174 = vmatpush1.xpose.msra.mxu0 %v141
    %175 = vmatprep.subr.mxu0 0.0
    %176 = vmatpush2.xpose.msra.mxu0 0.0
    %177 = vmatprep.subr.mxu0 0.0
    %178 = vmatpush2.xpose.msra.mxu0 0.0
    %179 = vmatprep.subr.mxu0 0.0
    %180 = vmatpush2.xpose.msra.mxu0 0.0
    %181 = vmatprep.subr.mxu0 0.0
    %182 = vmatpush2.xpose.msra.mxu0 0.0
    %183 = vmatprep.subr.mxu0 0.0
    %184 = vmatpush2.xpose.msra.mxu0 0.0
    %185 = vmatprep.subr.mxu0 0.0
    %186 = vmatpush2.xpose.msra.mxu0 0.0
    %187 = vmatprep.subr.mxu0 0.0
    %188 = vmatpush2.xpose.msra.mxu0 0.0
    %189 = vmatprep.subr.mxu0 0.0
    %190 = vmatpush2.xpose.msra.mxu0 0.0
    %191 = vmatprep.subr.mxu0 0.0
    %192 = vmatpush2.xpose.msra.mxu0 0.0
    %193 = vmatprep.subr.mxu0 0.0
    %194 = vmatpush2.xpose.msra.mxu0 0.0
    %195 = vmatprep.subr.mxu0 0.0
    %196 = vmatpush2.xpose.msra.mxu0 0.0
    %197 = vmatprep.subr.mxu0 0.0
    %198 = vmatpush2.xpose.msra.mxu0 0.0
    %199 = vmatprep.subr.mxu0 0.0
    %200 = vmatpush2.xpose.msra.mxu0 0.0
    %201 = vmatprep.subr.mxu0 0.0
    %202 = vmatpush2.xpose.msra.mxu0 0.0
    %203 = vmatprep.subr.mxu0 0.0
    %204 = vmatpush2.xpose.msra.mxu0 0.0
    %205 = vmatprep.subr.mxu0 0.0
    %206 = vmatpush2.xpose.msra.mxu0 0.0
    %207 = vmatprep.mubr.f32.mxu0 0.0
    %208 = vmatmul.mubr.f32.gmra.mxu0 %v139
    %v209 = vpop.f32.mrf.mxu0
    %v210 = vadd.f32 %v134, %v209
    %v211 = vpop.f32.mrf.mxu0
    %212 = vdwg.mxu0
    %vm213 = vcmask 64512
    %v214 = vsel %vm213, %v210, -inf
    %215 = vmax.xlane.f32.xlu0 %v214
    %v216 = vpop.xlane.xlu0 %215
    %v217 = vsub.f32 %v210, %v216
    %v218 = vmul.f32 %v217, 1.442695
    %v219 = vpow.pop %v218
    %v220 = vsel %vm213, %v219, 0.0
    %221 = vadd.xlane.f32.xlu0 %v220
    %v222 = vpop.xlane.xlu0 %221
    %v223 = vrcp.pop %v222
    %v224 = vmul.f32 %v219, %v223
    %v226 = vsel %vm213, %v224, 0
    %228 = vmatprep.subr.mxu0 0.0
    %229 = vmatpush1.msra.mxu0 0.0
    %230 = vmatprep.subr.mxu0 0.0
    %231 = vmatpush1.msra.mxu0 0.0
    %232 = vmatprep.subr.mxu0 0.0
    %233 = vmatpush1.msra.mxu0 0.0
    %234 = vmatprep.subr.mxu0 0.0
    %235 = vmatpush1.msra.mxu0 0.0
    %236 = vmatprep.subr.mxu0 0.0
    %237 = vmatpush1.msra.mxu0 0.0
    %238 = vmatprep.subr.mxu0 0.0
    %239 = vmatpush1.msra.mxu0 0.0
    %240 = vmatprep.subr.mxu0 0.0
    %241 = vmatpush1.msra.mxu0 0.0
    %242 = vmatprep.subr.mxu0 0.0
    %243 = vmatpush1.msra.mxu0 0.0
    %244 = vmatprep.subr.mxu0 0.0
    %245 = vmatpush1.msra.mxu0 0.0
    %246 = vmatprep.subr.mxu0 0.0
    %247 = vmatpush1.msra.mxu0 0.0
    %248 = vmatprep.subr.mxu0 0.0
    %249 = vmatpush1.msra.mxu0 0.0
    %250 = vmatprep.subr.mxu0 0.0
    %251 = vmatpush1.msra.mxu0 0.0
    %252 = vmatprep.subr.mxu0 0.0
    %253 = vmatpush1.msra.mxu0 0.0
    %254 = vmatprep.subr.mxu0 0.0
    %255 = vmatpush1.msra.mxu0 0.0
    %256 = vmatprep.subr.mxu0 0.0
    %257 = vmatpush1.msra.mxu0 0.0
    %258 = vmatprep.subr.mxu0 0.0
    %259 = vmatpush1.msra.mxu0 %v121
    %260 = vmatprep.subr.mxu0 0.0
    %261 = vmatpush2.msra.mxu0 0.0
    %262 = vmatprep.subr.mxu0 0.0
    %263 = vmatpush2.msra.mxu0 0.0
    %264 = vmatprep.subr.mxu0 0.0
    %265 = vmatpush2.msra.mxu0 0.0
    %266 = vmatprep.subr.mxu0 0.0
    %267 = vmatpush2.msra.mxu0 0.0
    %268 = vmatprep.subr.mxu0 0.0
    %269 = vmatpush2.msra.mxu0 0.0
    %270 = vmatprep.subr.mxu0 0.0
    %271 = vmatpush2.msra.mxu0 0.0
    %272 = vmatprep.subr.mxu0 0.0
    %273 = vmatpush2.msra.mxu0 0.0
    %274 = vmatprep.subr.mxu0 0.0
    %275 = vmatpush2.msra.mxu0 0.0
    %276 = vmatprep.subr.mxu0 0.0
    %277 = vmatpush2.msra.mxu0 0.0
    %278 = vmatprep.subr.mxu0 0.0
    %279 = vmatpush2.msra.mxu0 0.0
    %280 = vmatprep.subr.mxu0 0.0
    %281 = vmatpush2.msra.mxu0 0.0
    %282 = vmatprep.subr.mxu0 0.0
    %283 = vmatpush2.msra.mxu0 0.0
    %284 = vmatprep.subr.mxu0 0.0
    %285 = vmatpush2.msra.mxu0 0.0
    %286 = vmatprep.subr.mxu0 0.0
    %287 = vmatpush2.msra.mxu0 0.0
    %288 = vmatprep.subr.mxu0 0.0
    %289 = vmatpush2.msra.mxu0 0.0
    %290 = vmatprep.subr.mxu0 0.0
    %291 = vmatpush2.msra.mxu0 0.0
    %292 = vmatprep.mubr.f32.mxu0 0.0
    %293 = vmatmul.mubr.f32.gmra.mxu0 %v226
    %v294 = vpop.f32.mrf.mxu0
    %v295 = vadd.f32 0.0, %v294
    %v296 = vpop.f32.mrf.mxu0
    %297 = vdwg.mxu0
    %298 = vrot.lane.b32.xlu0 %v119, 112
    %v299 = vpop.permute.xlu0 %298
    %300 = vrot.lane.b32.xlu0 %v119, 48
    %v301 = vpop.permute.xlu0 %300
    %v302 = vsel %vm138, %v299, 0
    %v304 = vsel %vm138, %v301, 0
    %306 = vmatprep.subr.mxu0 0.0
    %307 = vmatpush1.xpose.msra.mxu0 0.0
    %308 = vmatprep.subr.mxu0 0.0
    %309 = vmatpush1.xpose.msra.mxu0 0.0
    %310 = vmatprep.subr.mxu0 0.0
    %311 = vmatpush1.xpose.msra.mxu0 0.0
    %312 = vmatprep.subr.mxu0 0.0
    %313 = vmatpush1.xpose.msra.mxu0 0.0
    %314 = vmatprep.subr.mxu0 0.0
    %315 = vmatpush1.xpose.msra.mxu0 0.0
    %316 = vmatprep.subr.mxu0 0.0
    %317 = vmatpush1.xpose.msra.mxu0 0.0
    %318 = vmatprep.subr.mxu0 0.0
    %319 = vmatpush1.xpose.msra.mxu0 0.0
    %320 = vmatprep.subr.mxu0 0.0
    %321 = vmatpush1.xpose.msra.mxu0 0.0
    %322 = vmatprep.subr.mxu0 0.0
    %323 = vmatpush1.xpose.msra.mxu0 0.0
    %324 = vmatprep.subr.mxu0 0.0
    %325 = vmatpush1.xpose.msra.mxu0 0.0
    %326 = vmatprep.subr.mxu0 0.0
    %327 = vmatpush1.xpose.msra.mxu0 0.0
    %328 = vmatprep.subr.mxu0 0.0
    %329 = vmatpush1.xpose.msra.mxu0 0.0
    %330 = vmatprep.subr.mxu0 0.0
    %331 = vmatpush1.xpose.msra.mxu0 0.0
    %332 = vmatprep.subr.mxu0 0.0
    %333 = vmatpush1.xpose.msra.mxu0 0.0
    %334 = vmatprep.subr.mxu0 0.0
    %335 = vmatpush1.xpose.msra.mxu0 0.0
    %336 = vmatprep.subr.mxu0 0.0
    %337 = vmatpush1.xpose.msra.mxu0 %v304
    %338 = vmatprep.subr.mxu0 0.0
    %339 = vmatpush2.xpose.msra.mxu0 0.0
    %340 = vmatprep.subr.mxu0 0.0
    %341 = vmatpush2.xpose.msra.mxu0 0.0
    %342 = vmatprep.subr.mxu0 0.0
    %343 = vmatpush2.xpose.msra.mxu0 0.0
    %344 = vmatprep.subr.mxu0 0.0
    %345 = vmatpush2.xpose.msra.mxu0 0.0
    %346 = vmatprep.subr.mxu0 0.0
    %347 = vmatpush2.xpose.msra.mxu0 0.0
    %348 = vmatprep.subr.mxu0 0.0
    %349 = vmatpush2.xpose.msra.mxu0 0.0
    %350 = vmatprep.subr.mxu0 0.0
    %351 = vmatpush2.xpose.msra.mxu0 0.0
    %352 = vmatprep.subr.mxu0 0.0
    %353 = vmatpush2.xpose.msra.mxu0 0.0
    %354 = vmatprep.subr.mxu0 0.0
    %355 = vmatpush2.xpose.msra.mxu0 0.0
    %356 = vmatprep.subr.mxu0 0.0
    %357 = vmatpush2.xpose.msra.mxu0 0.0
    %358 = vmatprep.subr.mxu0 0.0
    %359 = vmatpush2.xpose.msra.mxu0 0.0
    %360 = vmatprep.subr.mxu0 0.0
    %361 = vmatpush2.xpose.msra.mxu0 0.0
    %362 = vmatprep.subr.mxu0 0.0
    %363 = vmatpush2.xpose.msra.mxu0 0.0
    %364 = vmatprep.subr.mxu0 0.0
    %365 = vmatpush2.xpose.msra.mxu0 0.0
    %366 = vmatprep.subr.mxu0 0.0
    %367 = vmatpush2.xpose.msra.mxu0 0.0
    %368 = vmatprep.subr.mxu0 0.0
    %369 = vmatpush2.xpose.msra.mxu0 0.0
    %370 = vmatprep.mubr.f32.mxu0 0.0
    %371 = vmatmul.mubr.f32.gmra.mxu0 %v302
    %v372 = vpop.f32.mrf.mxu0
    %v373 = vadd.f32 %v134, %v372
    %v374 = vpop.f32.mrf.mxu0
    %375 = vdwg.mxu0
    %v376 = vsel %vm213, %v373, -inf
    %377 = vmax.xlane.f32.xlu0 %v376
    %v378 = vpop.xlane.xlu0 %377
    %v379 = vsub.f32 %v373, %v378
    %v380 = vmul.f32 %v379, 1.442695
    %v381 = vpow.pop %v380
    %v382 = vsel %vm213, %v381, 0.0
    %383 = vadd.xlane.f32.xlu0 %v382
    %v384 = vpop.xlane.xlu0 %383
    %v385 = vrcp.pop %v384
    %v386 = vmul.f32 %v381, %v385
    %388 = vrot.lane.b32.xlu0 %v121, 112
    %v389 = vpop.permute.xlu0 %388
    %v392 = vsel %vm213, %v386, 0
    %394 = vmatprep.subr.mxu0 0.0
    %395 = vmatpush1.msra.mxu0 0.0
    %396 = vmatprep.subr.mxu0 0.0
    %397 = vmatpush1.msra.mxu0 0.0
    %398 = vmatprep.subr.mxu0 0.0
    %399 = vmatpush1.msra.mxu0 0.0
    %400 = vmatprep.subr.mxu0 0.0
    %401 = vmatpush1.msra.mxu0 0.0
    %402 = vmatprep.subr.mxu0 0.0
    %403 = vmatpush1.msra.mxu0 0.0
    %404 = vmatprep.subr.mxu0 0.0
    %405 = vmatpush1.msra.mxu0 0.0
    %406 = vmatprep.subr.mxu0 0.0
    %407 = vmatpush1.msra.mxu0 0.0
    %408 = vmatprep.subr.mxu0 0.0
    %409 = vmatpush1.msra.mxu0 0.0
    %410 = vmatprep.subr.mxu0 0.0
    %411 = vmatpush1.msra.mxu0 0.0
    %412 = vmatprep.subr.mxu0 0.0
    %413 = vmatpush1.msra.mxu0 0.0
    %414 = vmatprep.subr.mxu0 0.0
    %415 = vmatpush1.msra.mxu0 0.0
    %416 = vmatprep.subr.mxu0 0.0
    %417 = vmatpush1.msra.mxu0 0.0
    %418 = vmatprep.subr.mxu0 0.0
    %419 = vmatpush1.msra.mxu0 0.0
    %420 = vmatprep.subr.mxu0 0.0
    %421 = vmatpush1.msra.mxu0 0.0
    %422 = vmatprep.subr.mxu0 0.0
    %423 = vmatpush1.msra.mxu0 0.0
    %424 = vmatprep.subr.mxu0 0.0
    %425 = vmatpush1.msra.mxu0 %v389
    %426 = vmatprep.subr.mxu0 0.0
    %427 = vmatpush2.msra.mxu0 0.0
    %428 = vmatprep.subr.mxu0 0.0
    %429 = vmatpush2.msra.mxu0 0.0
    %430 = vmatprep.subr.mxu0 0.0
    %431 = vmatpush2.msra.mxu0 0.0
    %432 = vmatprep.subr.mxu0 0.0
    %433 = vmatpush2.msra.mxu0 0.0
    %434 = vmatprep.subr.mxu0 0.0
    %435 = vmatpush2.msra.mxu0 0.0
    %436 = vmatprep.subr.mxu0 0.0
    %437 = vmatpush2.msra.mxu0 0.0
    %438 = vmatprep.subr.mxu0 0.0
    %439 = vmatpush2.msra.mxu0 0.0
    %440 = vmatprep.subr.mxu0 0.0
    %441 = vmatpush2.msra.mxu0 0.0
    %442 = vmatprep.subr.mxu0 0.0
    %443 = vmatpush2.msra.mxu0 0.0
    %444 = vmatprep.subr.mxu0 0.0
    %445 = vmatpush2.msra.mxu0 0.0
    %446 = vmatprep.subr.mxu0 0.0
    %447 = vmatpush2.msra.mxu0 0.0
    %448 = vmatprep.subr.mxu0 0.0
    %449 = vmatpush2.msra.mxu0 0.0
    %450 = vmatprep.subr.mxu0 0.0
    %451 = vmatpush2.msra.mxu0 0.0
    %452 = vmatprep.subr.mxu0 0.0
    %453 = vmatpush2.msra.mxu0 0.0
    %454 = vmatprep.subr.mxu0 0.0
    %455 = vmatpush2.msra.mxu0 0.0
    %456 = vmatprep.subr.mxu0 0.0
    %457 = vmatpush2.msra.mxu0 0.0
    %458 = vmatprep.mubr.f32.mxu0 0.0
    %459 = vmatmul.mubr.f32.gmra.mxu0 %v392
    %v460 = vpop.f32.mrf.mxu0
    %v461 = vadd.f32 0.0, %v460
    %v462 = vpop.f32.mrf.mxu0
    %463 = vdwg.mxu0
    %v465 = vsel %vm138, %v461, 0
    %467 = vmatprep.subr.mxu0 0.0
    %468 = vmatpush1.msra.mxu0 0.0
    %469 = vmatprep.subr.mxu0 0.0
    %470 = vmatpush1.msra.mxu0 0.0
    %471 = vmatprep.subr.mxu0 0.0
    %472 = vmatpush1.msra.mxu0 0.0
    %473 = vmatprep.subr.mxu0 0.0
    %474 = vmatpush1.msra.mxu0 0.0
    %475 = vmatprep.subr.mxu0 0.0
    %476 = vmatpush1.msra.mxu0 0.0
    %477 = vmatprep.subr.mxu0 0.0
    %478 = vmatpush1.msra.mxu0 0.0
    %479 = vmatprep.subr.mxu0 0.0
    %480 = vmatpush1.msra.mxu0 0.0
    %481 = vmatprep.subr.mxu0 0.0
    %482 = vmatpush1.msra.mxu0 0.0
    %483 = vmatprep.subr.mxu0 0.0
    %484 = vmatpush1.msra.mxu0 0.0
    %485 = vmatprep.subr.mxu0 0.0
    %486 = vmatpush1.msra.mxu0 0.0
    %487 = vmatprep.subr.mxu0 0.0
    %488 = vmatpush1.msra.mxu0 0.0
    %489 = vmatprep.subr.mxu0 0.0
    %490 = vmatpush1.msra.mxu0 0.0
    %491 = vmatprep.subr.mxu0 0.0
    %492 = vmatpush1.msra.mxu0 0.0
    %493 = vmatprep.subr.mxu0 0.0
    %494 = vmatpush1.msra.mxu0 0.0
    %495 = vmatprep.subr.mxu0 0.0
    %496 = vmatpush1.msra.mxu0 %v39
    %497 = vmatprep.subr.mxu0 0.0
    %498 = vmatpush1.msra.mxu0 %v38
    %499 = vmatprep.subr.mxu0 0.0
    %500 = vmatpush2.msra.mxu0 0.0
    %501 = vmatprep.subr.mxu0 0.0
    %502 = vmatpush2.msra.mxu0 0.0
    %503 = vmatprep.subr.mxu0 0.0
    %504 = vmatpush2.msra.mxu0 0.0
    %505 = vmatprep.subr.mxu0 0.0
    %506 = vmatpush2.msra.mxu0 0.0
    %507 = vmatprep.subr.mxu0 0.0
    %508 = vmatpush2.msra.mxu0 0.0
    %509 = vmatprep.subr.mxu0 0.0
    %510 = vmatpush2.msra.mxu0 0.0
    %511 = vmatprep.subr.mxu0 0.0
    %512 = vmatpush2.msra.mxu0 0.0
    %513 = vmatprep.subr.mxu0 0.0
    %514 = vmatpush2.msra.mxu0 0.0
    %515 = vmatprep.subr.mxu0 0.0
    %516 = vmatpush2.msra.mxu0 0.0
    %517 = vmatprep.subr.mxu0 0.0
    %518 = vmatpush2.msra.mxu0 0.0
    %519 = vmatprep.subr.mxu0 0.0
    %520 = vmatpush2.msra.mxu0 0.0
    %521 = vmatprep.subr.mxu0 0.0
    %522 = vmatpush2.msra.mxu0 0.0
    %523 = vmatprep.subr.mxu0 0.0
    %524 = vmatpush2.msra.mxu0 0.0
    %525 = vmatprep.subr.mxu0 0.0
    %526 = vmatpush2.msra.mxu0 0.0
    %527 = vmatprep.subr.mxu0 0.0
    %528 = vmatpush2.msra.mxu0 0.0
    %529 = vmatprep.subr.mxu0 0.0
    %530 = vmatpush2.msra.mxu0 0.0
    %531 = vmatprep.mubr.f32.mxu0 0.0
    %532 = vmatmul.mubr.f32.gmra.mxu0 %v465
    %v533 = vpop.f32.mrf.mxu0
    %v534 = vadd.f32 0.0, %v533
    %v535 = vpop.f32.mrf.mxu0
    %536 = vdwg.mxu0
    %v538 = vsel %vm138, %v295, 0
    %540 = vmatprep.subr.mxu0 0.0
    %541 = vmatpush1.msra.mxu0 0.0
    %542 = vmatprep.subr.mxu0 0.0
    %543 = vmatpush1.msra.mxu0 0.0
    %544 = vmatprep.subr.mxu0 0.0
    %545 = vmatpush1.msra.mxu0 0.0
    %546 = vmatprep.subr.mxu0 0.0
    %547 = vmatpush1.msra.mxu0 0.0
    %548 = vmatprep.subr.mxu0 0.0
    %549 = vmatpush1.msra.mxu0 0.0
    %550 = vmatprep.subr.mxu0 0.0
    %551 = vmatpush1.msra.mxu0 0.0
    %552 = vmatprep.subr.mxu0 0.0
    %553 = vmatpush1.msra.mxu0 0.0
    %554 = vmatprep.subr.mxu0 0.0
    %555 = vmatpush1.msra.mxu0 0.0
    %556 = vmatprep.subr.mxu0 0.0
    %557 = vmatpush1.msra.mxu0 0.0
    %558 = vmatprep.subr.mxu0 0.0
    %559 = vmatpush1.msra.mxu0 0.0
    %560 = vmatprep.subr.mxu0 0.0
    %561 = vmatpush1.msra.mxu0 0.0
    %562 = vmatprep.subr.mxu0 0.0
    %563 = vmatpush1.msra.mxu0 0.0
    %564 = vmatprep.subr.mxu0 0.0
    %565 = vmatpush1.msra.mxu0 0.0
    %566 = vmatprep.subr.mxu0 0.0
    %567 = vmatpush1.msra.mxu0 0.0
    %568 = vmatprep.subr.mxu0 0.0
    %569 = vmatpush1.msra.mxu0 %v37
    %570 = vmatprep.subr.mxu0 0.0
    %571 = vmatpush1.msra.mxu0 %v36
    %572 = vmatprep.subr.mxu0 0.0
    %573 = vmatpush2.msra.mxu0 0.0
    %574 = vmatprep.subr.mxu0 0.0
    %575 = vmatpush2.msra.mxu0 0.0
    %576 = vmatprep.subr.mxu0 0.0
    %577 = vmatpush2.msra.mxu0 0.0
    %578 = vmatprep.subr.mxu0 0.0
    %579 = vmatpush2.msra.mxu0 0.0
    %580 = vmatprep.subr.mxu0 0.0
    %581 = vmatpush2.msra.mxu0 0.0
    %582 = vmatprep.subr.mxu0 0.0
    %583 = vmatpush2.msra.mxu0 0.0
    %584 = vmatprep.subr.mxu0 0.0
    %585 = vmatpush2.msra.mxu0 0.0
    %586 = vmatprep.subr.mxu0 0.0
    %587 = vmatpush2.msra.mxu0 0.0
    %588 = vmatprep.subr.mxu0 0.0
    %589 = vmatpush2.msra.mxu0 0.0
    %590 = vmatprep.subr.mxu0 0.0
    %591 = vmatpush2.msra.mxu0 0.0
    %592 = vmatprep.subr.mxu0 0.0
    %593 = vmatpush2.msra.mxu0 0.0
    %594 = vmatprep.subr.mxu0 0.0
    %595 = vmatpush2.msra.mxu0 0.0
    %596 = vmatprep.subr.mxu0 0.0
    %597 = vmatpush2.msra.mxu0 0.0
    %598 = vmatprep.subr.mxu0 0.0
    %599 = vmatpush2.msra.mxu0 0.0
    %600 = vmatprep.subr.mxu0 0.0
    %601 = vmatpush2.msra.mxu0 0.0
    %602 = vmatprep.subr.mxu0 0.0
    %603 = vmatpush2.msra.mxu0 0.0
    %604 = vmatprep.mubr.f32.mxu0 0.0
    %605 = vmatmul.mubr.f32.gmra.mxu0 %v538
    %v606 = vpop.f32.mrf.mxu0
    %v607 = vadd.f32 %v534, %v606
    %v608 = vpop.f32.mrf.mxu0
    %609 = vdwg.mxu0
    %610 = vrot.lane.b32.xlu0 %v119, 96
    %v611 = vpop.permute.xlu0 %610
    %612 = vrot.lane.b32.xlu0 %v119, 32
    %v613 = vpop.permute.xlu0 %612
    %v614 = vsel %vm138, %v611, 0
    %v616 = vsel %vm138, %v613, 0
    %618 = vmatprep.subr.mxu0 0.0
    %619 = vmatpush1.xpose.msra.mxu0 0.0
    %620 = vmatprep.subr.mxu0 0.0
    %621 = vmatpush1.xpose.msra.mxu0 0.0
    %622 = vmatprep.subr.mxu0 0.0
    %623 = vmatpush1.xpose.msra.mxu0 0.0
    %624 = vmatprep.subr.mxu0 0.0
    %625 = vmatpush1.xpose.msra.mxu0 0.0
    %626 = vmatprep.subr.mxu0 0.0
    %627 = vmatpush1.xpose.msra.mxu0 0.0
    %628 = vmatprep.subr.mxu0 0.0
    %629 = vmatpush1.xpose.msra.mxu0 0.0
    %630 = vmatprep.subr.mxu0 0.0
    %631 = vmatpush1.xpose.msra.mxu0 0.0
    %632 = vmatprep.subr.mxu0 0.0
    %633 = vmatpush1.xpose.msra.mxu0 0.0
    %634 = vmatprep.subr.mxu0 0.0
    %635 = vmatpush1.xpose.msra.mxu0 0.0
    %636 = vmatprep.subr.mxu0 0.0
    %637 = vmatpush1.xpose.msra.mxu0 0.0
    %638 = vmatprep.subr.mxu0 0.0
    %639 = vmatpush1.xpose.msra.mxu0 0.0
    %640 = vmatprep.subr.mxu0 0.0
    %641 = vmatpush1.xpose.msra.mxu0 0.0
    %642 = vmatprep.subr.mxu0 0.0
    %643 = vmatpush1.xpose.msra.mxu0 0.0
    %644 = vmatprep.subr.mxu0 0.0
    %645 = vmatpush1.xpose.msra.mxu0 0.0
    %646 = vmatprep.subr.mxu0 0.0
    %647 = vmatpush1.xpose.msra.mxu0 0.0
    %648 = vmatprep.subr.mxu0 0.0
    %649 = vmatpush1.xpose.msra.mxu0 %v616
    %650 = vmatprep.subr.mxu0 0.0
    %651 = vmatpush2.xpose.msra.mxu0 0.0
    %652 = vmatprep.subr.mxu0 0.0
    %653 = vmatpush2.xpose.msra.mxu0 0.0
    %654 = vmatprep.subr.mxu0 0.0
    %655 = vmatpush2.xpose.msra.mxu0 0.0
    %656 = vmatprep.subr.mxu0 0.0
    %657 = vmatpush2.xpose.msra.mxu0 0.0
    %658 = vmatprep.subr.mxu0 0.0
    %659 = vmatpush2.xpose.msra.mxu0 0.0
    %660 = vmatprep.subr.mxu0 0.0
    %661 = vmatpush2.xpose.msra.mxu0 0.0
    %662 = vmatprep.subr.mxu0 0.0
    %663 = vmatpush2.xpose.msra.mxu0 0.0
    %664 = vmatprep.subr.mxu0 0.0
    %665 = vmatpush2.xpose.msra.mxu0 0.0
    %666 = vmatprep.subr.mxu0 0.0
    %667 = vmatpush2.xpose.msra.mxu0 0.0
    %668 = vmatprep.subr.mxu0 0.0
    %669 = vmatpush2.xpose.msra.mxu0 0.0
    %670 = vmatprep.subr.mxu0 0.0
    %671 = vmatpush2.xpose.msra.mxu0 0.0
    %672 = vmatprep.subr.mxu0 0.0
    %673 = vmatpush2.xpose.msra.mxu0 0.0
    %674 = vmatprep.subr.mxu0 0.0
    %675 = vmatpush2.xpose.msra.mxu0 0.0
    %676 = vmatprep.subr.mxu0 0.0
    %677 = vmatpush2.xpose.msra.mxu0 0.0
    %678 = vmatprep.subr.mxu0 0.0
    %679 = vmatpush2.xpose.msra.mxu0 0.0
    %680 = vmatprep.subr.mxu0 0.0
    %681 = vmatpush2.xpose.msra.mxu0 0.0
    %682 = vmatprep.mubr.f32.mxu0 0.0
    %683 = vmatmul.mubr.f32.gmra.mxu0 %v614
    %v684 = vpop.f32.mrf.mxu0
    %v685 = vadd.f32 %v134, %v684
    %v686 = vpop.f32.mrf.mxu0
    %687 = vdwg.mxu0
    %v688 = vsel %vm213, %v685, -inf
    %689 = vmax.xlane.f32.xlu0 %v688
    %v690 = vpop.xlane.xlu0 %689
    %v691 = vsub.f32 %v685, %v690
    %v692 = vmul.f32 %v691, 1.442695
    %v693 = vpow.pop %v692
    %v694 = vsel %vm213, %v693, 0.0
    %695 = vadd.xlane.f32.xlu0 %v694
    %v696 = vpop.xlane.xlu0 %695
    %v697 = vrcp.pop %v696
    %v698 = vmul.f32 %v693, %v697
    %699 = vrot.lane.b32.xlu0 %v121, 96
    %v700 = vpop.permute.xlu0 %699
    %v703 = vsel %vm213, %v698, 0
    %705 = vmatprep.subr.mxu0 0.0
    %706 = vmatpush1.msra.mxu0 0.0
    %707 = vmatprep.subr.mxu0 0.0
    %708 = vmatpush1.msra.mxu0 0.0
    %709 = vmatprep.subr.mxu0 0.0
    %710 = vmatpush1.msra.mxu0 0.0
    %711 = vmatprep.subr.mxu0 0.0
    %712 = vmatpush1.msra.mxu0 0.0
    %713 = vmatprep.subr.mxu0 0.0
    %714 = vmatpush1.msra.mxu0 0.0
    %715 = vmatprep.subr.mxu0 0.0
    %716 = vmatpush1.msra.mxu0 0.0
    %717 = vmatprep.subr.mxu0 0.0
    %718 = vmatpush1.msra.mxu0 0.0
    %719 = vmatprep.subr.mxu0 0.0
    %720 = vmatpush1.msra.mxu0 0.0
    %721 = vmatprep.subr.mxu0 0.0
    %722 = vmatpush1.msra.mxu0 0.0
    %723 = vmatprep.subr.mxu0 0.0
    %724 = vmatpush1.msra.mxu0 0.0
    %725 = vmatprep.subr.mxu0 0.0
    %726 = vmatpush1.msra.mxu0 0.0
    %727 = vmatprep.subr.mxu0 0.0
    %728 = vmatpush1.msra.mxu0 0.0
    %729 = vmatprep.subr.mxu0 0.0
    %730 = vmatpush1.msra.mxu0 0.0
    %731 = vmatprep.subr.mxu0 0.0
    %732 = vmatpush1.msra.mxu0 0.0
    %733 = vmatprep.subr.mxu0 0.0
    %734 = vmatpush1.msra.mxu0 0.0
    %735 = vmatprep.subr.mxu0 0.0
    %736 = vmatpush1.msra.mxu0 %v700
    %737 = vmatprep.subr.mxu0 0.0
    %738 = vmatpush2.msra.mxu0 0.0
    %739 = vmatprep.subr.mxu0 0.0
    %740 = vmatpush2.msra.mxu0 0.0
    %741 = vmatprep.subr.mxu0 0.0
    %742 = vmatpush2.msra.mxu0 0.0
    %743 = vmatprep.subr.mxu0 0.0
    %744 = vmatpush2.msra.mxu0 0.0
    %745 = vmatprep.subr.mxu0 0.0
    %746 = vmatpush2.msra.mxu0 0.0
    %747 = vmatprep.subr.mxu0 0.0
    %748 = vmatpush2.msra.mxu0 0.0
    %749 = vmatprep.subr.mxu0 0.0
    %750 = vmatpush2.msra.mxu0 0.0
    %751 = vmatprep.subr.mxu0 0.0
    %752 = vmatpush2.msra.mxu0 0.0
    %753 = vmatprep.subr.mxu0 0.0
    %754 = vmatpush2.msra.mxu0 0.0
    %755 = vmatprep.subr.mxu0 0.0
    %756 = vmatpush2.msra.mxu0 0.0
    %757 = vmatprep.subr.mxu0 0.0
    %758 = vmatpush2.msra.mxu0 0.0
    %759 = vmatprep.subr.mxu0 0.0
    %760 = vmatpush2.msra.mxu0 0.0
    %761 = vmatprep.subr.mxu0 0.0
    %762 = vmatpush2.msra.mxu0 0.0
    %763 = vmatprep.subr.mxu0 0.0
    %764 = vmatpush2.msra.mxu0 0.0
    %765 = vmatprep.subr.mxu0 0.0
    %766 = vmatpush2.msra.mxu0 0.0
    %767 = vmatprep.subr.mxu0 0.0
    %768 = vmatpush2.msra.mxu0 0.0
    %769 = vmatprep.mubr.f32.mxu0 0.0
    %770 = vmatmul.mubr.f32.gmra.mxu0 %v703
    %v771 = vpop.f32.mrf.mxu0
    %v772 = vadd.f32 0.0, %v771
    %v773 = vpop.f32.mrf.mxu0
    %774 = vdwg.mxu0
    %v776 = vsel %vm138, %v772, 0
    %778 = vmatprep.subr.mxu0 0.0
    %779 = vmatpush1.msra.mxu0 0.0
    %780 = vmatprep.subr.mxu0 0.0
    %781 = vmatpush1.msra.mxu0 0.0
    %782 = vmatprep.subr.mxu0 0.0
    %783 = vmatpush1.msra.mxu0 0.0
    %784 = vmatprep.subr.mxu0 0.0
    %785 = vmatpush1.msra.mxu0 0.0
    %786 = vmatprep.subr.mxu0 0.0
    %787 = vmatpush1.msra.mxu0 0.0
    %788 = vmatprep.subr.mxu0 0.0
    %789 = vmatpush1.msra.mxu0 0.0
    %790 = vmatprep.subr.mxu0 0.0
    %791 = vmatpush1.msra.mxu0 0.0
    %792 = vmatprep.subr.mxu0 0.0
    %793 = vmatpush1.msra.mxu0 0.0
    %794 = vmatprep.subr.mxu0 0.0
    %795 = vmatpush1.msra.mxu0 0.0
    %796 = vmatprep.subr.mxu0 0.0
    %797 = vmatpush1.msra.mxu0 0.0
    %798 = vmatprep.subr.mxu0 0.0
    %799 = vmatpush1.msra.mxu0 0.0
    %800 = vmatprep.subr.mxu0 0.0
    %801 = vmatpush1.msra.mxu0 0.0
    %802 = vmatprep.subr.mxu0 0.0
    %803 = vmatpush1.msra.mxu0 0.0
    %804 = vmatprep.subr.mxu0 0.0
    %805 = vmatpush1.msra.mxu0 0.0
    %806 = vmatprep.subr.mxu0 0.0
    %807 = vmatpush1.msra.mxu0 %v41
    %808 = vmatprep.subr.mxu0 0.0
    %809 = vmatpush1.msra.mxu0 %v40
    %810 = vmatprep.subr.mxu0 0.0
    %811 = vmatpush2.msra.mxu0 0.0
    %812 = vmatprep.subr.mxu0 0.0
    %813 = vmatpush2.msra.mxu0 0.0
    %814 = vmatprep.subr.mxu0 0.0
    %815 = vmatpush2.msra.mxu0 0.0
    %816 = vmatprep.subr.mxu0 0.0
    %817 = vmatpush2.msra.mxu0 0.0
    %818 = vmatprep.subr.mxu0 0.0
    %819 = vmatpush2.msra.mxu0 0.0
    %820 = vmatprep.subr.mxu0 0.0
    %821 = vmatpush2.msra.mxu0 0.0
    %822 = vmatprep.subr.mxu0 0.0
    %823 = vmatpush2.msra.mxu0 0.0
    %824 = vmatprep.subr.mxu0 0.0
    %825 = vmatpush2.msra.mxu0 0.0
    %826 = vmatprep.subr.mxu0 0.0
    %827 = vmatpush2.msra.mxu0 0.0
    %828 = vmatprep.subr.mxu0 0.0
    %829 = vmatpush2.msra.mxu0 0.0
    %830 = vmatprep.subr.mxu0 0.0
    %831 = vmatpush2.msra.mxu0 0.0
    %832 = vmatprep.subr.mxu0 0.0
    %833 = vmatpush2.msra.mxu0 0.0
    %834 = vmatprep.subr.mxu0 0.0
    %835 = vmatpush2.msra.mxu0 0.0
    %836 = vmatprep.subr.mxu0 0.0
    %837 = vmatpush2.msra.mxu0 0.0
    %838 = vmatprep.subr.mxu0 0.0
    %839 = vmatpush2.msra.mxu0 0.0
    %840 = vmatprep.subr.mxu0 0.0
    %841 = vmatpush2.msra.mxu0 0.0
    %842 = vmatprep.mubr.f32.mxu0 0.0
    %843 = vmatmul.mubr.f32.gmra.mxu0 %v776
    %v844 = vpop.f32.mrf.mxu0
    %v845 = vadd.f32 0.0, %v844
    %v846 = vpop.f32.mrf.mxu0
    %847 = vdwg.mxu0
    %v848 = vadd.f32 %v607, %v845
    %849 = vrot.lane.b32.xlu0 %v119, 80
    %v850 = vpop.permute.xlu0 %849
    %851 = vrot.lane.b32.xlu0 %v119, 16
    %v852 = vpop.permute.xlu0 %851
    %v853 = vsel %vm138, %v850, 0
    %v855 = vsel %vm138, %v852, 0
    %857 = vmatprep.subr.mxu0 0.0
    %858 = vmatpush1.xpose.msra.mxu0 0.0
    %859 = vmatprep.subr.mxu0 0.0
    %860 = vmatpush1.xpose.msra.mxu0 0.0
    %861 = vmatprep.subr.mxu0 0.0
    %862 = vmatpush1.xpose.msra.mxu0 0.0
    %863 = vmatprep.subr.mxu0 0.0
    %864 = vmatpush1.xpose.msra.mxu0 0.0
    %865 = vmatprep.subr.mxu0 0.0
    %866 = vmatpush1.xpose.msra.mxu0 0.0
    %867 = vmatprep.subr.mxu0 0.0
    %868 = vmatpush1.xpose.msra.mxu0 0.0
    %869 = vmatprep.subr.mxu0 0.0
    %870 = vmatpush1.xpose.msra.mxu0 0.0
    %871 = vmatprep.subr.mxu0 0.0
    %872 = vmatpush1.xpose.msra.mxu0 0.0
    %873 = vmatprep.subr.mxu0 0.0
    %874 = vmatpush1.xpose.msra.mxu0 0.0
    %875 = vmatprep.subr.mxu0 0.0
    %876 = vmatpush1.xpose.msra.mxu0 0.0
    %877 = vmatprep.subr.mxu0 0.0
    %878 = vmatpush1.xpose.msra.mxu0 0.0
    %879 = vmatprep.subr.mxu0 0.0
    %880 = vmatpush1.xpose.msra.mxu0 0.0
    %881 = vmatprep.subr.mxu0 0.0
    %882 = vmatpush1.xpose.msra.mxu0 0.0
    %883 = vmatprep.subr.mxu0 0.0
    %884 = vmatpush1.xpose.msra.mxu0 0.0
    %885 = vmatprep.subr.mxu0 0.0
    %886 = vmatpush1.xpose.msra.mxu0 0.0
    %887 = vmatprep.subr.mxu0 0.0
    %888 = vmatpush1.xpose.msra.mxu0 %v855
    %889 = vmatprep.subr.mxu0 0.0
    %890 = vmatpush2.xpose.msra.mxu0 0.0
    %891 = vmatprep.subr.mxu0 0.0
    %892 = vmatpush2.xpose.msra.mxu0 0.0
    %893 = vmatprep.subr.mxu0 0.0
    %894 = vmatpush2.xpose.msra.mxu0 0.0
    %895 = vmatprep.subr.mxu0 0.0
    %896 = vmatpush2.xpose.msra.mxu0 0.0
    %897 = vmatprep.subr.mxu0 0.0
    %898 = vmatpush2.xpose.msra.mxu0 0.0
    %899 = vmatprep.subr.mxu0 0.0
    %900 = vmatpush2.xpose.msra.mxu0 0.0
    %901 = vmatprep.subr.mxu0 0.0
    %902 = vmatpush2.xpose.msra.mxu0 0.0
    %903 = vmatprep.subr.mxu0 0.0
    %904 = vmatpush2.xpose.msra.mxu0 0.0
    %905 = vmatprep.subr.mxu0 0.0
    %906 = vmatpush2.xpose.msra.mxu0 0.0
    %907 = vmatprep.subr.mxu0 0.0
    %908 = vmatpush2.xpose.msra.mxu0 0.0
    %909 = vmatprep.subr.mxu0 0.0
    %910 = vmatpush2.xpose.msra.mxu0 0.0
    %911 = vmatprep.subr.mxu0 0.0
    %912 = vmatpush2.xpose.msra.mxu0 0.0
    %913 = vmatprep.subr.mxu0 0.0
    %914 = vmatpush2.xpose.msra.mxu0 0.0
    %915 = vmatprep.subr.mxu0 0.0
    %916 = vmatpush2.xpose.msra.mxu0 0.0
    %917 = vmatprep.subr.mxu0 0.0
    %918 = vmatpush2.xpose.msra.mxu0 0.0
    %919 = vmatprep.subr.mxu0 0.0
    %920 = vmatpush2.xpose.msra.mxu0 0.0
    %921 = vmatprep.mubr.f32.mxu0 0.0
    %922 = vmatmul.mubr.f32.gmra.mxu0 %v853
    %v923 = vpop.f32.mrf.mxu0
    %v924 = vadd.f32 %v134, %v923
    %v925 = vpop.f32.mrf.mxu0
    %926 = vdwg.mxu0
    %v927 = vsel %vm213, %v924, -inf
    %928 = vmax.xlane.f32.xlu0 %v927
    %v929 = vpop.xlane.xlu0 %928
    %v930 = vsub.f32 %v924, %v929
    %v931 = vmul.f32 %v930, 1.442695
    %v932 = vpow.pop %v931
    %v933 = vsel %vm213, %v932, 0.0
    %934 = vadd.xlane.f32.xlu0 %v933
    %v935 = vpop.xlane.xlu0 %934
    %v936 = vrcp.pop %v935
    %v937 = vmul.f32 %v932, %v936
    %938 = vrot.lane.b32.xlu0 %v121, 80
    %v939 = vpop.permute.xlu0 %938
    %v942 = vsel %vm213, %v937, 0
    %944 = vmatprep.subr.mxu0 0.0
    %945 = vmatpush1.msra.mxu0 0.0
    %946 = vmatprep.subr.mxu0 0.0
    %947 = vmatpush1.msra.mxu0 0.0
    %948 = vmatprep.subr.mxu0 0.0
    %949 = vmatpush1.msra.mxu0 0.0
    %950 = vmatprep.subr.mxu0 0.0
    %951 = vmatpush1.msra.mxu0 0.0
    %952 = vmatprep.subr.mxu0 0.0
    %953 = vmatpush1.msra.mxu0 0.0
    %954 = vmatprep.subr.mxu0 0.0
    %955 = vmatpush1.msra.mxu0 0.0
    %956 = vmatprep.subr.mxu0 0.0
    %957 = vmatpush1.msra.mxu0 0.0
    %958 = vmatprep.subr.mxu0 0.0
    %959 = vmatpush1.msra.mxu0 0.0
    %960 = vmatprep.subr.mxu0 0.0
    %961 = vmatpush1.msra.mxu0 0.0
    %962 = vmatprep.subr.mxu0 0.0
    %963 = vmatpush1.msra.mxu0 0.0
    %964 = vmatprep.subr.mxu0 0.0
    %965 = vmatpush1.msra.mxu0 0.0
    %966 = vmatprep.subr.mxu0 0.0
    %967 = vmatpush1.msra.mxu0 0.0
    %968 = vmatprep.subr.mxu0 0.0
    %969 = vmatpush1.msra.mxu0 0.0
    %970 = vmatprep.subr.mxu0 0.0
    %971 = vmatpush1.msra.mxu0 0.0
    %972 = vmatprep.subr.mxu0 0.0
    %973 = vmatpush1.msra.mxu0 0.0
    %974 = vmatprep.subr.mxu0 0.0
    %975 = vmatpush1.msra.mxu0 %v939
    %976 = vmatprep.subr.mxu0 0.0
    %977 = vmatpush2.msra.mxu0 0.0
    %978 = vmatprep.subr.mxu0 0.0
    %979 = vmatpush2.msra.mxu0 0.0
    %980 = vmatprep.subr.mxu0 0.0
    %981 = vmatpush2.msra.mxu0 0.0
    %982 = vmatprep.subr.mxu0 0.0
    %983 = vmatpush2.msra.mxu0 0.0
    %984 = vmatprep.subr.mxu0 0.0
    %985 = vmatpush2.msra.mxu0 0.0
    %986 = vmatprep.subr.mxu0 0.0
    %987 = vmatpush2.msra.mxu0 0.0
    %988 = vmatprep.subr.mxu0 0.0
    %989 = vmatpush2.msra.mxu0 0.0
    %990 = vmatprep.subr.mxu0 0.0
    %991 = vmatpush2.msra.mxu0 0.0
    %992 = vmatprep.subr.mxu0 0.0
    %993 = vmatpush2.msra.mxu0 0.0
    %994 = vmatprep.subr.mxu0 0.0
    %995 = vmatpush2.msra.mxu0 0.0
    %996 = vmatprep.subr.mxu0 0.0
    %997 = vmatpush2.msra.mxu0 0.0
    %998 = vmatprep.subr.mxu0 0.0
    %999 = vmatpush2.msra.mxu0 0.0
    %1000 = vmatprep.subr.mxu0 0.0
    %1001 = vmatpush2.msra.mxu0 0.0
    %1002 = vmatprep.subr.mxu0 0.0
    %1003 = vmatpush2.msra.mxu0 0.0
    %1004 = vmatprep.subr.mxu0 0.0
    %1005 = vmatpush2.msra.mxu0 0.0
    %1006 = vmatprep.subr.mxu0 0.0
    %1007 = vmatpush2.msra.mxu0 0.0
    %1008 = vmatprep.mubr.f32.mxu0 0.0
    %1009 = vmatmul.mubr.f32.gmra.mxu0 %v942
    %v1010 = vpop.f32.mrf.mxu0
    %v1011 = vadd.f32 0.0, %v1010
    %v1012 = vpop.f32.mrf.mxu0
    %1013 = vdwg.mxu0
    %v1015 = vsel %vm138, %v1011, 0
    %1017 = vmatprep.subr.mxu0 0.0
    %1018 = vmatpush1.msra.mxu0 0.0
    %1019 = vmatprep.subr.mxu0 0.0
    %1020 = vmatpush1.msra.mxu0 0.0
    %1021 = vmatprep.subr.mxu0 0.0
    %1022 = vmatpush1.msra.mxu0 0.0
    %1023 = vmatprep.subr.mxu0 0.0
    %1024 = vmatpush1.msra.mxu0 0.0
    %1025 = vmatprep.subr.mxu0 0.0
    %1026 = vmatpush1.msra.mxu0 0.0
    %1027 = vmatprep.subr.mxu0 0.0
    %1028 = vmatpush1.msra.mxu0 0.0
    %1029 = vmatprep.subr.mxu0 0.0
    %1030 = vmatpush1.msra.mxu0 0.0
    %1031 = vmatprep.subr.mxu0 0.0
    %1032 = vmatpush1.msra.mxu0 0.0
    %1033 = vmatprep.subr.mxu0 0.0
    %1034 = vmatpush1.msra.mxu0 0.0
    %1035 = vmatprep.subr.mxu0 0.0
    %1036 = vmatpush1.msra.mxu0 0.0
    %1037 = vmatprep.subr.mxu0 0.0
    %1038 = vmatpush1.msra.mxu0 0.0
    %1039 = vmatprep.subr.mxu0 0.0
    %1040 = vmatpush1.msra.mxu0 0.0
    %1041 = vmatprep.subr.mxu0 0.0
    %1042 = vmatpush1.msra.mxu0 0.0
    %1043 = vmatprep.subr.mxu0 0.0
    %1044 = vmatpush1.msra.mxu0 0.0
    %1045 = vmatprep.subr.mxu0 0.0
    %1046 = vmatpush1.msra.mxu0 %v43
    %1047 = vmatprep.subr.mxu0 0.0
    %1048 = vmatpush1.msra.mxu0 %v42
    %1049 = vmatprep.subr.mxu0 0.0
    %1050 = vmatpush2.msra.mxu0 0.0
    %1051 = vmatprep.subr.mxu0 0.0
    %1052 = vmatpush2.msra.mxu0 0.0
    %1053 = vmatprep.subr.mxu0 0.0
    %1054 = vmatpush2.msra.mxu0 0.0
    %1055 = vmatprep.subr.mxu0 0.0
    %1056 = vmatpush2.msra.mxu0 0.0
    %1057 = vmatprep.subr.mxu0 0.0
    %1058 = vmatpush2.msra.mxu0 0.0
    %1059 = vmatprep.subr.mxu0 0.0
    %1060 = vmatpush2.msra.mxu0 0.0
    %1061 = vmatprep.subr.mxu0 0.0
    %1062 = vmatpush2.msra.mxu0 0.0
    %1063 = vmatprep.subr.mxu0 0.0
    %1064 = vmatpush2.msra.mxu0 0.0
    %1065 = vmatprep.subr.mxu0 0.0
    %1066 = vmatpush2.msra.mxu0 0.0
    %1067 = vmatprep.subr.mxu0 0.0
    %1068 = vmatpush2.msra.mxu0 0.0
    %1069 = vmatprep.subr.mxu0 0.0
    %1070 = vmatpush2.msra.mxu0 0.0
    %1071 = vmatprep.subr.mxu0 0.0
    %1072 = vmatpush2.msra.mxu0 0.0
    %1073 = vmatprep.subr.mxu0 0.0
    %1074 = vmatpush2.msra.mxu0 0.0
    %1075 = vmatprep.subr.mxu0 0.0
    %1076 = vmatpush2.msra.mxu0 0.0
    %1077 = vmatprep.subr.mxu0 0.0
    %1078 = vmatpush2.msra.mxu0 0.0
    %1079 = vmatprep.subr.mxu0 0.0
    %1080 = vmatpush2.msra.mxu0 0.0
    %1081 = vmatprep.mubr.f32.mxu0 0.0
    %1082 = vmatmul.mubr.f32.gmra.mxu0 %v1015
    %v1083 = vpop.f32.mrf.mxu0
    %v1084 = vadd.f32 0.0, %v1083
    %v1085 = vpop.f32.mrf.mxu0
    %1086 = vdwg.mxu0
    %v1087 = vadd.f32 %v848, %v1084
    %v1089 = vlaneseq
    %v1090 = vshrl.u32 %v1089, 7
    %v1091 = vsub.s32 0, %v1090
    %v1092 = vrot.slane %v44, %v1091
    %v1094 = vadd.f32 %v1087, %v1092
    %1095 = vst.msk [vmem:[#allocation2] sm:$0xff] %vm45, %v1094
    %1097 = vrot.lane.b32.xlu0 %v125, 64
    %v1098 = vpop.permute.xlu0 %1097
    %v1099 = vsel %vm138, %v125, 0
    %v1101 = vsel %vm138, %v1098, 0
    %1103 = vmatprep.subr.mxu0 0.0
    %1104 = vmatpush1.xpose.msra.mxu0 0.0
    %1105 = vmatprep.subr.mxu0 0.0
    %1106 = vmatpush1.xpose.msra.mxu0 0.0
    %1107 = vmatprep.subr.mxu0 0.0
    %1108 = vmatpush1.xpose.msra.mxu0 0.0
    %1109 = vmatprep.subr.mxu0 0.0
    %1110 = vmatpush1.xpose.msra.mxu0 0.0
    %1111 = vmatprep.subr.mxu0 0.0
    %1112 = vmatpush1.xpose.msra.mxu0 0.0
    %1113 = vmatprep.subr.mxu0 0.0
    %1114 = vmatpush1.xpose.msra.mxu0 0.0
    %1115 = vmatprep.subr.mxu0 0.0
    %1116 = vmatpush1.xpose.msra.mxu0 0.0
    %1117 = vmatprep.subr.mxu0 0.0
    %1118 = vmatpush1.xpose.msra.mxu0 0.0
    %1119 = vmatprep.subr.mxu0 0.0
    %1120 = vmatpush1.xpose.msra.mxu0 0.0
    %1121 = vmatprep.subr.mxu0 0.0
    %1122 = vmatpush1.xpose.msra.mxu0 0.0
    %1123 = vmatprep.subr.mxu0 0.0
    %1124 = vmatpush1.xpose.msra.mxu0 0.0
    %1125 = vmatprep.subr.mxu0 0.0
    %1126 = vmatpush1.xpose.msra.mxu0 0.0
    %1127 = vmatprep.subr.mxu0 0.0
    %1128 = vmatpush1.xpose.msra.mxu0 0.0
    %1129 = vmatprep.subr.mxu0 0.0
    %1130 = vmatpush1.xpose.msra.mxu0 0.0
    %1131 = vmatprep.subr.mxu0 0.0
    %1132 = vmatpush1.xpose.msra.mxu0 0.0
    %1133 = vmatprep.subr.mxu0 0.0
    %1134 = vmatpush1.xpose.msra.mxu0 %v1101
    %1135 = vmatprep.subr.mxu0 0.0
    %1136 = vmatpush2.xpose.msra.mxu0 0.0
    %1137 = vmatprep.subr.mxu0 0.0
    %1138 = vmatpush2.xpose.msra.mxu0 0.0
    %1139 = vmatprep.subr.mxu0 0.0
    %1140 = vmatpush2.xpose.msra.mxu0 0.0
    %1141 = vmatprep.subr.mxu0 0.0
    %1142 = vmatpush2.xpose.msra.mxu0 0.0
    %1143 = vmatprep.subr.mxu0 0.0
    %1144 = vmatpush2.xpose.msra.mxu0 0.0
    %1145 = vmatprep.subr.mxu0 0.0
    %1146 = vmatpush2.xpose.msra.mxu0 0.0
    %1147 = vmatprep.subr.mxu0 0.0
    %1148 = vmatpush2.xpose.msra.mxu0 0.0
    %1149 = vmatprep.subr.mxu0 0.0
    %1150 = vmatpush2.xpose.msra.mxu0 0.0
    %1151 = vmatprep.subr.mxu0 0.0
    %1152 = vmatpush2.xpose.msra.mxu0 0.0
    %1153 = vmatprep.subr.mxu0 0.0
    %1154 = vmatpush2.xpose.msra.mxu0 0.0
    %1155 = vmatprep.subr.mxu0 0.0
    %1156 = vmatpush2.xpose.msra.mxu0 0.0
    %1157 = vmatprep.subr.mxu0 0.0
    %1158 = vmatpush2.xpose.msra.mxu0 0.0
    %1159 = vmatprep.subr.mxu0 0.0
    %1160 = vmatpush2.xpose.msra.mxu0 0.0
    %1161 = vmatprep.subr.mxu0 0.0
    %1162 = vmatpush2.xpose.msra.mxu0 0.0
    %1163 = vmatprep.subr.mxu0 0.0
    %1164 = vmatpush2.xpose.msra.mxu0 0.0
    %1165 = vmatprep.subr.mxu0 0.0
    %1166 = vmatpush2.xpose.msra.mxu0 0.0
    %1167 = vmatprep.mubr.f32.mxu0 0.0
    %1168 = vmatmul.mubr.f32.gmra.mxu0 %v1099
    %v1169 = vpop.f32.mrf.mxu0
    %v1170 = vadd.f32 %v134, %v1169
    %v1171 = vpop.f32.mrf.mxu0
    %1172 = vdwg.mxu0
    %v1173 = vsel %vm213, %v1170, -inf
    %1174 = vmax.xlane.f32.xlu0 %v1173
    %v1175 = vpop.xlane.xlu0 %1174
    %v1176 = vsub.f32 %v1170, %v1175
    %v1177 = vmul.f32 %v1176, 1.442695
    %v1178 = vpow.pop %v1177
    %v1179 = vsel %vm213, %v1178, 0.0
    %1180 = vadd.xlane.f32.xlu0 %v1179
    %v1181 = vpop.xlane.xlu0 %1180
    %v1182 = vrcp.pop %v1181
    %v1183 = vmul.f32 %v1178, %v1182
    %v1185 = vsel %vm213, %v1183, 0
    %1187 = vmatprep.subr.mxu0 0.0
    %1188 = vmatpush1.msra.mxu0 0.0
    %1189 = vmatprep.subr.mxu0 0.0
    %1190 = vmatpush1.msra.mxu0 0.0
    %1191 = vmatprep.subr.mxu0 0.0
    %1192 = vmatpush1.msra.mxu0 0.0
    %1193 = vmatprep.subr.mxu0 0.0
    %1194 = vmatpush1.msra.mxu0 0.0
    %1195 = vmatprep.subr.mxu0 0.0
    %1196 = vmatpush1.msra.mxu0 0.0
    %1197 = vmatprep.subr.mxu0 0.0
    %1198 = vmatpush1.msra.mxu0 0.0
    %1199 = vmatprep.subr.mxu0 0.0
    %1200 = vmatpush1.msra.mxu0 0.0
    %1201 = vmatprep.subr.mxu0 0.0
    %1202 = vmatpush1.msra.mxu0 0.0
    %1203 = vmatprep.subr.mxu0 0.0
    %1204 = vmatpush1.msra.mxu0 0.0
    %1205 = vmatprep.subr.mxu0 0.0
    %1206 = vmatpush1.msra.mxu0 0.0
    %1207 = vmatprep.subr.mxu0 0.0
    %1208 = vmatpush1.msra.mxu0 0.0
    %1209 = vmatprep.subr.mxu0 0.0
    %1210 = vmatpush1.msra.mxu0 0.0
    %1211 = vmatprep.subr.mxu0 0.0
    %1212 = vmatpush1.msra.mxu0 0.0
    %1213 = vmatprep.subr.mxu0 0.0
    %1214 = vmatpush1.msra.mxu0 0.0
    %1215 = vmatprep.subr.mxu0 0.0
    %1216 = vmatpush1.msra.mxu0 0.0
    %1217 = vmatprep.subr.mxu0 0.0
    %1218 = vmatpush1.msra.mxu0 %v127
    %1219 = vmatprep.subr.mxu0 0.0
    %1220 = vmatpush2.msra.mxu0 0.0
    %1221 = vmatprep.subr.mxu0 0.0
    %1222 = vmatpush2.msra.mxu0 0.0
    %1223 = vmatprep.subr.mxu0 0.0
    %1224 = vmatpush2.msra.mxu0 0.0
    %1225 = vmatprep.subr.mxu0 0.0
    %1226 = vmatpush2.msra.mxu0 0.0
    %1227 = vmatprep.subr.mxu0 0.0
    %1228 = vmatpush2.msra.mxu0 0.0
    %1229 = vmatprep.subr.mxu0 0.0
    %1230 = vmatpush2.msra.mxu0 0.0
    %1231 = vmatprep.subr.mxu0 0.0
    %1232 = vmatpush2.msra.mxu0 0.0
    %1233 = vmatprep.subr.mxu0 0.0
    %1234 = vmatpush2.msra.mxu0 0.0
    %1235 = vmatprep.subr.mxu0 0.0
    %1236 = vmatpush2.msra.mxu0 0.0
    %1237 = vmatprep.subr.mxu0 0.0
    %1238 = vmatpush2.msra.mxu0 0.0
    %1239 = vmatprep.subr.mxu0 0.0
    %1240 = vmatpush2.msra.mxu0 0.0
    %1241 = vmatprep.subr.mxu0 0.0
    %1242 = vmatpush2.msra.mxu0 0.0
    %1243 = vmatprep.subr.mxu0 0.0
    %1244 = vmatpush2.msra.mxu0 0.0
    %1245 = vmatprep.subr.mxu0 0.0
    %1246 = vmatpush2.msra.mxu0 0.0
    %1247 = vmatprep.subr.mxu0 0.0
    %1248 = vmatpush2.msra.mxu0 0.0
    %1249 = vmatprep.subr.mxu0 0.0
    %1250 = vmatpush2.msra.mxu0 0.0
    %1251 = vmatprep.mubr.f32.mxu0 0.0
    %1252 = vmatmul.mubr.f32.gmra.mxu0 %v1185
    %v1253 = vpop.f32.mrf.mxu0
    %v1254 = vadd.f32 0.0, %v1253
    %v1255 = vpop.f32.mrf.mxu0
    %1256 = vdwg.mxu0
    %1257 = vrot.lane.b32.xlu0 %v125, 112
    %v1258 = vpop.permute.xlu0 %1257
    %1259 = vrot.lane.b32.xlu0 %v125, 48
    %v1260 = vpop.permute.xlu0 %1259
    %v1261 = vsel %vm138, %v1258, 0
    %v1263 = vsel %vm138, %v1260, 0
    %1265 = vmatprep.subr.mxu0 0.0
    %1266 = vmatpush1.xpose.msra.mxu0 0.0
    %1267 = vmatprep.subr.mxu0 0.0
    %1268 = vmatpush1.xpose.msra.mxu0 0.0
    %1269 = vmatprep.subr.mxu0 0.0
    %1270 = vmatpush1.xpose.msra.mxu0 0.0
    %1271 = vmatprep.subr.mxu0 0.0
    %1272 = vmatpush1.xpose.msra.mxu0 0.0
    %1273 = vmatprep.subr.mxu0 0.0
    %1274 = vmatpush1.xpose.msra.mxu0 0.0
    %1275 = vmatprep.subr.mxu0 0.0
    %1276 = vmatpush1.xpose.msra.mxu0 0.0
    %1277 = vmatprep.subr.mxu0 0.0
    %1278 = vmatpush1.xpose.msra.mxu0 0.0
    %1279 = vmatprep.subr.mxu0 0.0
    %1280 = vmatpush1.xpose.msra.mxu0 0.0
    %1281 = vmatprep.subr.mxu0 0.0
    %1282 = vmatpush1.xpose.msra.mxu0 0.0
    %1283 = vmatprep.subr.mxu0 0.0
    %1284 = vmatpush1.xpose.msra.mxu0 0.0
    %1285 = vmatprep.subr.mxu0 0.0
    %1286 = vmatpush1.xpose.msra.mxu0 0.0
    %1287 = vmatprep.subr.mxu0 0.0
    %1288 = vmatpush1.xpose.msra.mxu0 0.0
    %1289 = vmatprep.subr.mxu0 0.0
    %1290 = vmatpush1.xpose.msra.mxu0 0.0
    %1291 = vmatprep.subr.mxu0 0.0
    %1292 = vmatpush1.xpose.msra.mxu0 0.0
    %1293 = vmatprep.subr.mxu0 0.0
    %1294 = vmatpush1.xpose.msra.mxu0 0.0
    %1295 = vmatprep.subr.mxu0 0.0
    %1296 = vmatpush1.xpose.msra.mxu0 %v1263
    %1297 = vmatprep.subr.mxu0 0.0
    %1298 = vmatpush2.xpose.msra.mxu0 0.0
    %1299 = vmatprep.subr.mxu0 0.0
    %1300 = vmatpush2.xpose.msra.mxu0 0.0
    %1301 = vmatprep.subr.mxu0 0.0
    %1302 = vmatpush2.xpose.msra.mxu0 0.0
    %1303 = vmatprep.subr.mxu0 0.0
    %1304 = vmatpush2.xpose.msra.mxu0 0.0
    %1305 = vmatprep.subr.mxu0 0.0
    %1306 = vmatpush2.xpose.msra.mxu0 0.0
    %1307 = vmatprep.subr.mxu0 0.0
    %1308 = vmatpush2.xpose.msra.mxu0 0.0
    %1309 = vmatprep.subr.mxu0 0.0
    %1310 = vmatpush2.xpose.msra.mxu0 0.0
    %1311 = vmatprep.subr.mxu0 0.0
    %1312 = vmatpush2.xpose.msra.mxu0 0.0
    %1313 = vmatprep.subr.mxu0 0.0
    %1314 = vmatpush2.xpose.msra.mxu0 0.0
    %1315 = vmatprep.subr.mxu0 0.0
    %1316 = vmatpush2.xpose.msra.mxu0 0.0
    %1317 = vmatprep.subr.mxu0 0.0
    %1318 = vmatpush2.xpose.msra.mxu0 0.0
    %1319 = vmatprep.subr.mxu0 0.0
    %1320 = vmatpush2.xpose.msra.mxu0 0.0
    %1321 = vmatprep.subr.mxu0 0.0
    %1322 = vmatpush2.xpose.msra.mxu0 0.0
    %1323 = vmatprep.subr.mxu0 0.0
    %1324 = vmatpush2.xpose.msra.mxu0 0.0
    %1325 = vmatprep.subr.mxu0 0.0
    %1326 = vmatpush2.xpose.msra.mxu0 0.0
    %1327 = vmatprep.subr.mxu0 0.0
    %1328 = vmatpush2.xpose.msra.mxu0 0.0
    %1329 = vmatprep.mubr.f32.mxu0 0.0
    %1330 = vmatmul.mubr.f32.gmra.mxu0 %v1261
    %v1331 = vpop.f32.mrf.mxu0
    %v1332 = vadd.f32 %v134, %v1331
    %v1333 = vpop.f32.mrf.mxu0
    %1334 = vdwg.mxu0
    %v1335 = vsel %vm213, %v1332, -inf
    %1336 = vmax.xlane.f32.xlu0 %v1335
    %v1337 = vpop.xlane.xlu0 %1336
    %v1338 = vsub.f32 %v1332, %v1337
    %v1339 = vmul.f32 %v1338, 1.442695
    %v1340 = vpow.pop %v1339
    %v1341 = vsel %vm213, %v1340, 0.0
    %1342 = vadd.xlane.f32.xlu0 %v1341
    %v1343 = vpop.xlane.xlu0 %1342
    %v1344 = vrcp.pop %v1343
    %v1345 = vmul.f32 %v1340, %v1344
    %1347 = vrot.lane.b32.xlu0 %v127, 112
    %v1348 = vpop.permute.xlu0 %1347
    %v1351 = vsel %vm213, %v1345, 0
    %1353 = vmatprep.subr.mxu0 0.0
    %1354 = vmatpush1.msra.mxu0 0.0
    %1355 = vmatprep.subr.mxu0 0.0
    %1356 = vmatpush1.msra.mxu0 0.0
    %1357 = vmatprep.subr.mxu0 0.0
    %1358 = vmatpush1.msra.mxu0 0.0
    %1359 = vmatprep.subr.mxu0 0.0
    %1360 = vmatpush1.msra.mxu0 0.0
    %1361 = vmatprep.subr.mxu0 0.0
    %1362 = vmatpush1.msra.mxu0 0.0
    %1363 = vmatprep.subr.mxu0 0.0
    %1364 = vmatpush1.msra.mxu0 0.0
    %1365 = vmatprep.subr.mxu0 0.0
    %1366 = vmatpush1.msra.mxu0 0.0
    %1367 = vmatprep.subr.mxu0 0.0
    %1368 = vmatpush1.msra.mxu0 0.0
    %1369 = vmatprep.subr.mxu0 0.0
    %1370 = vmatpush1.msra.mxu0 0.0
    %1371 = vmatprep.subr.mxu0 0.0
    %1372 = vmatpush1.msra.mxu0 0.0
    %1373 = vmatprep.subr.mxu0 0.0
    %1374 = vmatpush1.msra.mxu0 0.0
    %1375 = vmatprep.subr.mxu0 0.0
    %1376 = vmatpush1.msra.mxu0 0.0
    %1377 = vmatprep.subr.mxu0 0.0
    %1378 = vmatpush1.msra.mxu0 0.0
    %1379 = vmatprep.subr.mxu0 0.0
    %1380 = vmatpush1.msra.mxu0 0.0
    %1381 = vmatprep.subr.mxu0 0.0
    %1382 = vmatpush1.msra.mxu0 0.0
    %1383 = vmatprep.subr.mxu0 0.0
    %1384 = vmatpush1.msra.mxu0 %v1348
    %1385 = vmatprep.subr.mxu0 0.0
    %1386 = vmatpush2.msra.mxu0 0.0
    %1387 = vmatprep.subr.mxu0 0.0
    %1388 = vmatpush2.msra.mxu0 0.0
    %1389 = vmatprep.subr.mxu0 0.0
    %1390 = vmatpush2.msra.mxu0 0.0
    %1391 = vmatprep.subr.mxu0 0.0
    %1392 = vmatpush2.msra.mxu0 0.0
    %1393 = vmatprep.subr.mxu0 0.0
    %1394 = vmatpush2.msra.mxu0 0.0
    %1395 = vmatprep.subr.mxu0 0.0
    %1396 = vmatpush2.msra.mxu0 0.0
    %1397 = vmatprep.subr.mxu0 0.0
    %1398 = vmatpush2.msra.mxu0 0.0
    %1399 = vmatprep.subr.mxu0 0.0
    %1400 = vmatpush2.msra.mxu0 0.0
    %1401 = vmatprep.subr.mxu0 0.0
    %1402 = vmatpush2.msra.mxu0 0.0
    %1403 = vmatprep.subr.mxu0 0.0
    %1404 = vmatpush2.msra.mxu0 0.0
    %1405 = vmatprep.subr.mxu0 0.0
    %1406 = vmatpush2.msra.mxu0 0.0
    %1407 = vmatprep.subr.mxu0 0.0
    %1408 = vmatpush2.msra.mxu0 0.0
    %1409 = vmatprep.subr.mxu0 0.0
    %1410 = vmatpush2.msra.mxu0 0.0
    %1411 = vmatprep.subr.mxu0 0.0
    %1412 = vmatpush2.msra.mxu0 0.0
    %1413 = vmatprep.subr.mxu0 0.0
    %1414 = vmatpush2.msra.mxu0 0.0
    %1415 = vmatprep.subr.mxu0 0.0
    %1416 = vmatpush2.msra.mxu0 0.0
    %1417 = vmatprep.mubr.f32.mxu0 0.0
    %1418 = vmatmul.mubr.f32.gmra.mxu0 %v1351
    %v1419 = vpop.f32.mrf.mxu0
    %v1420 = vadd.f32 0.0, %v1419
    %v1421 = vpop.f32.mrf.mxu0
    %1422 = vdwg.mxu0
    %v1424 = vsel %vm138, %v1420, 0
    %1426 = vmatprep.subr.mxu0 0.0
    %1427 = vmatpush1.msra.mxu0 0.0
    %1428 = vmatprep.subr.mxu0 0.0
    %1429 = vmatpush1.msra.mxu0 0.0
    %1430 = vmatprep.subr.mxu0 0.0
    %1431 = vmatpush1.msra.mxu0 0.0
    %1432 = vmatprep.subr.mxu0 0.0
    %1433 = vmatpush1.msra.mxu0 0.0
    %1434 = vmatprep.subr.mxu0 0.0
    %1435 = vmatpush1.msra.mxu0 0.0
    %1436 = vmatprep.subr.mxu0 0.0
    %1437 = vmatpush1.msra.mxu0 0.0
    %1438 = vmatprep.subr.mxu0 0.0
    %1439 = vmatpush1.msra.mxu0 0.0
    %1440 = vmatprep.subr.mxu0 0.0
    %1441 = vmatpush1.msra.mxu0 0.0
    %1442 = vmatprep.subr.mxu0 0.0
    %1443 = vmatpush1.msra.mxu0 0.0
    %1444 = vmatprep.subr.mxu0 0.0
    %1445 = vmatpush1.msra.mxu0 0.0
    %1446 = vmatprep.subr.mxu0 0.0
    %1447 = vmatpush1.msra.mxu0 0.0
    %1448 = vmatprep.subr.mxu0 0.0
    %1449 = vmatpush1.msra.mxu0 0.0
    %1450 = vmatprep.subr.mxu0 0.0
    %1451 = vmatpush1.msra.mxu0 0.0
    %1452 = vmatprep.subr.mxu0 0.0
    %1453 = vmatpush1.msra.mxu0 0.0
    %1454 = vmatprep.subr.mxu0 0.0
    %1455 = vmatpush1.msra.mxu0 %v39
    %1456 = vmatprep.subr.mxu0 0.0
    %1457 = vmatpush1.msra.mxu0 %v38
    %1458 = vmatprep.subr.mxu0 0.0
    %1459 = vmatpush2.msra.mxu0 0.0
    %1460 = vmatprep.subr.mxu0 0.0
    %1461 = vmatpush2.msra.mxu0 0.0
    %1462 = vmatprep.subr.mxu0 0.0
    %1463 = vmatpush2.msra.mxu0 0.0
    %1464 = vmatprep.subr.mxu0 0.0
    %1465 = vmatpush2.msra.mxu0 0.0
    %1466 = vmatprep.subr.mxu0 0.0
    %1467 = vmatpush2.msra.mxu0 0.0
    %1468 = vmatprep.subr.mxu0 0.0
    %1469 = vmatpush2.msra.mxu0 0.0
    %1470 = vmatprep.subr.mxu0 0.0
    %1471 = vmatpush2.msra.mxu0 0.0
    %1472 = vmatprep.subr.mxu0 0.0
    %1473 = vmatpush2.msra.mxu0 0.0
    %1474 = vmatprep.subr.mxu0 0.0
    %1475 = vmatpush2.msra.mxu0 0.0
    %1476 = vmatprep.subr.mxu0 0.0
    %1477 = vmatpush2.msra.mxu0 0.0
    %1478 = vmatprep.subr.mxu0 0.0
    %1479 = vmatpush2.msra.mxu0 0.0
    %1480 = vmatprep.subr.mxu0 0.0
    %1481 = vmatpush2.msra.mxu0 0.0
    %1482 = vmatprep.subr.mxu0 0.0
    %1483 = vmatpush2.msra.mxu0 0.0
    %1484 = vmatprep.subr.mxu0 0.0
    %1485 = vmatpush2.msra.mxu0 0.0
    %1486 = vmatprep.subr.mxu0 0.0
    %1487 = vmatpush2.msra.mxu0 0.0
    %1488 = vmatprep.subr.mxu0 0.0
    %1489 = vmatpush2.msra.mxu0 0.0
    %1490 = vmatprep.mubr.f32.mxu0 0.0
    %1491 = vmatmul.mubr.f32.gmra.mxu0 %v1424
    %v1492 = vpop.f32.mrf.mxu0
    %v1493 = vadd.f32 0.0, %v1492
    %v1494 = vpop.f32.mrf.mxu0
    %1495 = vdwg.mxu0
    %v1497 = vsel %vm138, %v1254, 0
    %1499 = vmatprep.subr.mxu0 0.0
    %1500 = vmatpush1.msra.mxu0 0.0
    %1501 = vmatprep.subr.mxu0 0.0
    %1502 = vmatpush1.msra.mxu0 0.0
    %1503 = vmatprep.subr.mxu0 0.0
    %1504 = vmatpush1.msra.mxu0 0.0
    %1505 = vmatprep.subr.mxu0 0.0
    %1506 = vmatpush1.msra.mxu0 0.0
    %1507 = vmatprep.subr.mxu0 0.0
    %1508 = vmatpush1.msra.mxu0 0.0
    %1509 = vmatprep.subr.mxu0 0.0
    %1510 = vmatpush1.msra.mxu0 0.0
    %1511 = vmatprep.subr.mxu0 0.0
    %1512 = vmatpush1.msra.mxu0 0.0
    %1513 = vmatprep.subr.mxu0 0.0
    %1514 = vmatpush1.msra.mxu0 0.0
    %1515 = vmatprep.subr.mxu0 0.0
    %1516 = vmatpush1.msra.mxu0 0.0
    %1517 = vmatprep.subr.mxu0 0.0
    %1518 = vmatpush1.msra.mxu0 0.0
    %1519 = vmatprep.subr.mxu0 0.0
    %1520 = vmatpush1.msra.mxu0 0.0
    %1521 = vmatprep.subr.mxu0 0.0
    %1522 = vmatpush1.msra.mxu0 0.0
    %1523 = vmatprep.subr.mxu0 0.0
    %1524 = vmatpush1.msra.mxu0 0.0
    %1525 = vmatprep.subr.mxu0 0.0
    %1526 = vmatpush1.msra.mxu0 0.0
    %1527 = vmatprep.subr.mxu0 0.0
    %1528 = vmatpush1.msra.mxu0 %v37
    %1529 = vmatprep.subr.mxu0 0.0
    %1530 = vmatpush1.msra.mxu0 %v36
    %1531 = vmatprep.subr.mxu0 0.0
    %1532 = vmatpush2.msra.mxu0 0.0
    %1533 = vmatprep.subr.mxu0 0.0
    %1534 = vmatpush2.msra.mxu0 0.0
    %1535 = vmatprep.subr.mxu0 0.0
    %1536 = vmatpush2.msra.mxu0 0.0
    %1537 = vmatprep.subr.mxu0 0.0
    %1538 = vmatpush2.msra.mxu0 0.0
    %1539 = vmatprep.subr.mxu0 0.0
    %1540 = vmatpush2.msra.mxu0 0.0
    %1541 = vmatprep.subr.mxu0 0.0
    %1542 = vmatpush2.msra.mxu0 0.0
    %1543 = vmatprep.subr.mxu0 0.0
    %1544 = vmatpush2.msra.mxu0 0.0
    %1545 = vmatprep.subr.mxu0 0.0
    %1546 = vmatpush2.msra.mxu0 0.0
    %1547 = vmatprep.subr.mxu0 0.0
    %1548 = vmatpush2.msra.mxu0 0.0
    %1549 = vmatprep.subr.mxu0 0.0
    %1550 = vmatpush2.msra.mxu0 0.0
    %1551 = vmatprep.subr.mxu0 0.0
    %1552 = vmatpush2.msra.mxu0 0.0
    %1553 = vmatprep.subr.mxu0 0.0
    %1554 = vmatpush2.msra.mxu0 0.0
    %1555 = vmatprep.subr.mxu0 0.0
    %1556 = vmatpush2.msra.mxu0 0.0
    %1557 = vmatprep.subr.mxu0 0.0
    %1558 = vmatpush2.msra.mxu0 0.0
    %1559 = vmatprep.subr.mxu0 0.0
    %1560 = vmatpush2.msra.mxu0 0.0
    %1561 = vmatprep.subr.mxu0 0.0
    %1562 = vmatpush2.msra.mxu0 0.0
    %1563 = vmatprep.mubr.f32.mxu0 0.0
    %1564 = vmatmul.mubr.f32.gmra.mxu0 %v1497
    %v1565 = vpop.f32.mrf.mxu0
    %v1566 = vadd.f32 %v1493, %v1565
    %v1567 = vpop.f32.mrf.mxu0
    %1568 = vdwg.mxu0
    %1569 = vrot.lane.b32.xlu0 %v125, 96
    %v1570 = vpop.permute.xlu0 %1569
    %1571 = vrot.lane.b32.xlu0 %v125, 32
    %v1572 = vpop.permute.xlu0 %1571
    %v1573 = vsel %vm138, %v1570, 0
    %v1575 = vsel %vm138, %v1572, 0
    %1577 = vmatprep.subr.mxu0 0.0
    %1578 = vmatpush1.xpose.msra.mxu0 0.0
    %1579 = vmatprep.subr.mxu0 0.0
    %1580 = vmatpush1.xpose.msra.mxu0 0.0
    %1581 = vmatprep.subr.mxu0 0.0
    %1582 = vmatpush1.xpose.msra.mxu0 0.0
    %1583 = vmatprep.subr.mxu0 0.0
    %1584 = vmatpush1.xpose.msra.mxu0 0.0
    %1585 = vmatprep.subr.mxu0 0.0
    %1586 = vmatpush1.xpose.msra.mxu0 0.0
    %1587 = vmatprep.subr.mxu0 0.0
    %1588 = vmatpush1.xpose.msra.mxu0 0.0
    %1589 = vmatprep.subr.mxu0 0.0
    %1590 = vmatpush1.xpose.msra.mxu0 0.0
    %1591 = vmatprep.subr.mxu0 0.0
    %1592 = vmatpush1.xpose.msra.mxu0 0.0
    %1593 = vmatprep.subr.mxu0 0.0
    %1594 = vmatpush1.xpose.msra.mxu0 0.0
    %1595 = vmatprep.subr.mxu0 0.0
    %1596 = vmatpush1.xpose.msra.mxu0 0.0
    %1597 = vmatprep.subr.mxu0 0.0
    %1598 = vmatpush1.xpose.msra.mxu0 0.0
    %1599 = vmatprep.subr.mxu0 0.0
    %1600 = vmatpush1.xpose.msra.mxu0 0.0
    %1601 = vmatprep.subr.mxu0 0.0
    %1602 = vmatpush1.xpose.msra.mxu0 0.0
    %1603 = vmatprep.subr.mxu0 0.0
    %1604 = vmatpush1.xpose.msra.mxu0 0.0
    %1605 = vmatprep.subr.mxu0 0.0
    %1606 = vmatpush1.xpose.msra.mxu0 0.0
    %1607 = vmatprep.subr.mxu0 0.0
    %1608 = vmatpush1.xpose.msra.mxu0 %v1575
    %1609 = vmatprep.subr.mxu0 0.0
    %1610 = vmatpush2.xpose.msra.mxu0 0.0
    %1611 = vmatprep.subr.mxu0 0.0
    %1612 = vmatpush2.xpose.msra.mxu0 0.0
    %1613 = vmatprep.subr.mxu0 0.0
    %1614 = vmatpush2.xpose.msra.mxu0 0.0
    %1615 = vmatprep.subr.mxu0 0.0
    %1616 = vmatpush2.xpose.msra.mxu0 0.0
    %1617 = vmatprep.subr.mxu0 0.0
    %1618 = vmatpush2.xpose.msra.mxu0 0.0
    %1619 = vmatprep.subr.mxu0 0.0
    %1620 = vmatpush2.xpose.msra.mxu0 0.0
    %1621 = vmatprep.subr.mxu0 0.0
    %1622 = vmatpush2.xpose.msra.mxu0 0.0
    %1623 = vmatprep.subr.mxu0 0.0
    %1624 = vmatpush2.xpose.msra.mxu0 0.0
    %1625 = vmatprep.subr.mxu0 0.0
    %1626 = vmatpush2.xpose.msra.mxu0 0.0
    %1627 = vmatprep.subr.mxu0 0.0
    %1628 = vmatpush2.xpose.msra.mxu0 0.0
    %1629 = vmatprep.subr.mxu0 0.0
    %1630 = vmatpush2.xpose.msra.mxu0 0.0
    %1631 = vmatprep.subr.mxu0 0.0
    %1632 = vmatpush2.xpose.msra.mxu0 0.0
    %1633 = vmatprep.subr.mxu0 0.0
    %1634 = vmatpush2.xpose.msra.mxu0 0.0
    %1635 = vmatprep.subr.mxu0 0.0
    %1636 = vmatpush2.xpose.msra.mxu0 0.0
    %1637 = vmatprep.subr.mxu0 0.0
    %1638 = vmatpush2.xpose.msra.mxu0 0.0
    %1639 = vmatprep.subr.mxu0 0.0
    %1640 = vmatpush2.xpose.msra.mxu0 0.0
    %1641 = vmatprep.mubr.f32.mxu0 0.0
    %1642 = vmatmul.mubr.f32.gmra.mxu0 %v1573
    %v1643 = vpop.f32.mrf.mxu0
    %v1644 = vadd.f32 %v134, %v1643
    %v1645 = vpop.f32.mrf.mxu0
    %1646 = vdwg.mxu0
    %v1647 = vsel %vm213, %v1644, -inf
    %1648 = vmax.xlane.f32.xlu0 %v1647
    %v1649 = vpop.xlane.xlu0 %1648
    %v1650 = vsub.f32 %v1644, %v1649
    %v1651 = vmul.f32 %v1650, 1.442695
    %v1652 = vpow.pop %v1651
    %v1653 = vsel %vm213, %v1652, 0.0
    %1654 = vadd.xlane.f32.xlu0 %v1653
    %v1655 = vpop.xlane.xlu0 %1654
    %v1656 = vrcp.pop %v1655
    %v1657 = vmul.f32 %v1652, %v1656
    %1658 = vrot.lane.b32.xlu0 %v127, 96
    %v1659 = vpop.permute.xlu0 %1658
    %v1662 = vsel %vm213, %v1657, 0
    %1664 = vmatprep.subr.mxu0 0.0
    %1665 = vmatpush1.msra.mxu0 0.0
    %1666 = vmatprep.subr.mxu0 0.0
    %1667 = vmatpush1.msra.mxu0 0.0
    %1668 = vmatprep.subr.mxu0 0.0
    %1669 = vmatpush1.msra.mxu0 0.0
    %1670 = vmatprep.subr.mxu0 0.0
    %1671 = vmatpush1.msra.mxu0 0.0
    %1672 = vmatprep.subr.mxu0 0.0
    %1673 = vmatpush1.msra.mxu0 0.0
    %1674 = vmatprep.subr.mxu0 0.0
    %1675 = vmatpush1.msra.mxu0 0.0
    %1676 = vmatprep.subr.mxu0 0.0
    %1677 = vmatpush1.msra.mxu0 0.0
    %1678 = vmatprep.subr.mxu0 0.0
    %1679 = vmatpush1.msra.mxu0 0.0
    %1680 = vmatprep.subr.mxu0 0.0
    %1681 = vmatpush1.msra.mxu0 0.0
    %1682 = vmatprep.subr.mxu0 0.0
    %1683 = vmatpush1.msra.mxu0 0.0
    %1684 = vmatprep.subr.mxu0 0.0
    %1685 = vmatpush1.msra.mxu0 0.0
    %1686 = vmatprep.subr.mxu0 0.0
    %1687 = vmatpush1.msra.mxu0 0.0
    %1688 = vmatprep.subr.mxu0 0.0
    %1689 = vmatpush1.msra.mxu0 0.0
    %1690 = vmatprep.subr.mxu0 0.0
    %1691 = vmatpush1.msra.mxu0 0.0
    %1692 = vmatprep.subr.mxu0 0.0
    %1693 = vmatpush1.msra.mxu0 0.0
    %1694 = vmatprep.subr.mxu0 0.0
    %1695 = vmatpush1.msra.mxu0 %v1659
    %1696 = vmatprep.subr.mxu0 0.0
    %1697 = vmatpush2.msra.mxu0 0.0
    %1698 = vmatprep.subr.mxu0 0.0
    %1699 = vmatpush2.msra.mxu0 0.0
    %1700 = vmatprep.subr.mxu0 0.0
    %1701 = vmatpush2.msra.mxu0 0.0
    %1702 = vmatprep.subr.mxu0 0.0
    %1703 = vmatpush2.msra.mxu0 0.0
    %1704 = vmatprep.subr.mxu0 0.0
    %1705 = vmatpush2.msra.mxu0 0.0
    %1706 = vmatprep.subr.mxu0 0.0
    %1707 = vmatpush2.msra.mxu0 0.0
    %1708 = vmatprep.subr.mxu0 0.0
    %1709 = vmatpush2.msra.mxu0 0.0
    %1710 = vmatprep.subr.mxu0 0.0
    %1711 = vmatpush2.msra.mxu0 0.0
    %1712 = vmatprep.subr.mxu0 0.0
    %1713 = vmatpush2.msra.mxu0 0.0
    %1714 = vmatprep.subr.mxu0 0.0
    %1715 = vmatpush2.msra.mxu0 0.0
    %1716 = vmatprep.subr.mxu0 0.0
    %1717 = vmatpush2.msra.mxu0 0.0
    %1718 = vmatprep.subr.mxu0 0.0
    %1719 = vmatpush2.msra.mxu0 0.0
    %1720 = vmatprep.subr.mxu0 0.0
    %1721 = vmatpush2.msra.mxu0 0.0
    %1722 = vmatprep.subr.mxu0 0.0
    %1723 = vmatpush2.msra.mxu0 0.0
    %1724 = vmatprep.subr.mxu0 0.0
    %1725 = vmatpush2.msra.mxu0 0.0
    %1726 = vmatprep.subr.mxu0 0.0
    %1727 = vmatpush2.msra.mxu0 0.0
    %1728 = vmatprep.mubr.f32.mxu0 0.0
    %1729 = vmatmul.mubr.f32.gmra.mxu0 %v1662
    %v1730 = vpop.f32.mrf.mxu0
    %v1731 = vadd.f32 0.0, %v1730
    %v1732 = vpop.f32.mrf.mxu0
    %1733 = vdwg.mxu0
    %v1735 = vsel %vm138, %v1731, 0
    %1737 = vmatprep.subr.mxu0 0.0
    %1738 = vmatpush1.msra.mxu0 0.0
    %1739 = vmatprep.subr.mxu0 0.0
    %1740 = vmatpush1.msra.mxu0 0.0
    %1741 = vmatprep.subr.mxu0 0.0
    %1742 = vmatpush1.msra.mxu0 0.0
    %1743 = vmatprep.subr.mxu0 0.0
    %1744 = vmatpush1.msra.mxu0 0.0
    %1745 = vmatprep.subr.mxu0 0.0
    %1746 = vmatpush1.msra.mxu0 0.0
    %1747 = vmatprep.subr.mxu0 0.0
    %1748 = vmatpush1.msra.mxu0 0.0
    %1749 = vmatprep.subr.mxu0 0.0
    %1750 = vmatpush1.msra.mxu0 0.0
    %1751 = vmatprep.subr.mxu0 0.0
    %1752 = vmatpush1.msra.mxu0 0.0
    %1753 = vmatprep.subr.mxu0 0.0
    %1754 = vmatpush1.msra.mxu0 0.0
    %1755 = vmatprep.subr.mxu0 0.0
    %1756 = vmatpush1.msra.mxu0 0.0
    %1757 = vmatprep.subr.mxu0 0.0
    %1758 = vmatpush1.msra.mxu0 0.0
    %1759 = vmatprep.subr.mxu0 0.0
    %1760 = vmatpush1.msra.mxu0 0.0
    %1761 = vmatprep.subr.mxu0 0.0
    %1762 = vmatpush1.msra.mxu0 0.0
    %1763 = vmatprep.subr.mxu0 0.0
    %1764 = vmatpush1.msra.mxu0 0.0
    %1765 = vmatprep.subr.mxu0 0.0
    %1766 = vmatpush1.msra.mxu0 %v41
    %1767 = vmatprep.subr.mxu0 0.0
    %1768 = vmatpush1.msra.mxu0 %v40
    %1769 = vmatprep.subr.mxu0 0.0
    %1770 = vmatpush2.msra.mxu0 0.0
    %1771 = vmatprep.subr.mxu0 0.0
    %1772 = vmatpush2.msra.mxu0 0.0
    %1773 = vmatprep.subr.mxu0 0.0
    %1774 = vmatpush2.msra.mxu0 0.0
    %1775 = vmatprep.subr.mxu0 0.0
    %1776 = vmatpush2.msra.mxu0 0.0
    %1777 = vmatprep.subr.mxu0 0.0
    %1778 = vmatpush2.msra.mxu0 0.0
    %1779 = vmatprep.subr.mxu0 0.0
    %1780 = vmatpush2.msra.mxu0 0.0
    %1781 = vmatprep.subr.mxu0 0.0
    %1782 = vmatpush2.msra.mxu0 0.0
    %1783 = vmatprep.subr.mxu0 0.0
    %1784 = vmatpush2.msra.mxu0 0.0
    %1785 = vmatprep.subr.mxu0 0.0
    %1786 = vmatpush2.msra.mxu0 0.0
    %1787 = vmatprep.subr.mxu0 0.0
    %1788 = vmatpush2.msra.mxu0 0.0
    %1789 = vmatprep.subr.mxu0 0.0
    %1790 = vmatpush2.msra.mxu0 0.0
    %1791 = vmatprep.subr.mxu0 0.0
    %1792 = vmatpush2.msra.mxu0 0.0
    %1793 = vmatprep.subr.mxu0 0.0
    %1794 = vmatpush2.msra.mxu0 0.0
    %1795 = vmatprep.subr.mxu0 0.0
    %1796 = vmatpush2.msra.mxu0 0.0
    %1797 = vmatprep.subr.mxu0 0.0
    %1798 = vmatpush2.msra.mxu0 0.0
    %1799 = vmatprep.subr.mxu0 0.0
    %1800 = vmatpush2.msra.mxu0 0.0
    %1801 = vmatprep.mubr.f32.mxu0 0.0
    %1802 = vmatmul.mubr.f32.gmra.mxu0 %v1735
    %v1803 = vpop.f32.mrf.mxu0
    %v1804 = vadd.f32 0.0, %v1803
    %v1805 = vpop.f32.mrf.mxu0
    %1806 = vdwg.mxu0
    %v1807 = vadd.f32 %v1566, %v1804
    %1808 = vrot.lane.b32.xlu0 %v125, 80
    %v1809 = vpop.permute.xlu0 %1808
    %1810 = vrot.lane.b32.xlu0 %v125, 16
    %v1811 = vpop.permute.xlu0 %1810
    %v1812 = vsel %vm138, %v1809, 0
    %v1814 = vsel %vm138, %v1811, 0
    %1816 = vmatprep.subr.mxu0 0.0
    %1817 = vmatpush1.xpose.msra.mxu0 0.0
    %1818 = vmatprep.subr.mxu0 0.0
    %1819 = vmatpush1.xpose.msra.mxu0 0.0
    %1820 = vmatprep.subr.mxu0 0.0
    %1821 = vmatpush1.xpose.msra.mxu0 0.0
    %1822 = vmatprep.subr.mxu0 0.0
    %1823 = vmatpush1.xpose.msra.mxu0 0.0
    %1824 = vmatprep.subr.mxu0 0.0
    %1825 = vmatpush1.xpose.msra.mxu0 0.0
    %1826 = vmatprep.subr.mxu0 0.0
    %1827 = vmatpush1.xpose.msra.mxu0 0.0
    %1828 = vmatprep.subr.mxu0 0.0
    %1829 = vmatpush1.xpose.msra.mxu0 0.0
    %1830 = vmatprep.subr.mxu0 0.0
    %1831 = vmatpush1.xpose.msra.mxu0 0.0
    %1832 = vmatprep.subr.mxu0 0.0
    %1833 = vmatpush1.xpose.msra.mxu0 0.0
    %1834 = vmatprep.subr.mxu0 0.0
    %1835 = vmatpush1.xpose.msra.mxu0 0.0
    %1836 = vmatprep.subr.mxu0 0.0
    %1837 = vmatpush1.xpose.msra.mxu0 0.0
    %1838 = vmatprep.subr.mxu0 0.0
    %1839 = vmatpush1.xpose.msra.mxu0 0.0
    %1840 = vmatprep.subr.mxu0 0.0
    %1841 = vmatpush1.xpose.msra.mxu0 0.0
    %1842 = vmatprep.subr.mxu0 0.0
    %1843 = vmatpush1.xpose.msra.mxu0 0.0
    %1844 = vmatprep.subr.mxu0 0.0
    %1845 = vmatpush1.xpose.msra.mxu0 0.0
    %1846 = vmatprep.subr.mxu0 0.0
    %1847 = vmatpush1.xpose.msra.mxu0 %v1814
    %1848 = vmatprep.subr.mxu0 0.0
    %1849 = vmatpush2.xpose.msra.mxu0 0.0
    %1850 = vmatprep.subr.mxu0 0.0
    %1851 = vmatpush2.xpose.msra.mxu0 0.0
    %1852 = vmatprep.subr.mxu0 0.0
    %1853 = vmatpush2.xpose.msra.mxu0 0.0
    %1854 = vmatprep.subr.mxu0 0.0
    %1855 = vmatpush2.xpose.msra.mxu0 0.0
    %1856 = vmatprep.subr.mxu0 0.0
    %1857 = vmatpush2.xpose.msra.mxu0 0.0
    %1858 = vmatprep.subr.mxu0 0.0
    %1859 = vmatpush2.xpose.msra.mxu0 0.0
    %1860 = vmatprep.subr.mxu0 0.0
    %1861 = vmatpush2.xpose.msra.mxu0 0.0
    %1862 = vmatprep.subr.mxu0 0.0
    %1863 = vmatpush2.xpose.msra.mxu0 0.0
    %1864 = vmatprep.subr.mxu0 0.0
    %1865 = vmatpush2.xpose.msra.mxu0 0.0
    %1866 = vmatprep.subr.mxu0 0.0
    %1867 = vmatpush2.xpose.msra.mxu0 0.0
    %1868 = vmatprep.subr.mxu0 0.0
    %1869 = vmatpush2.xpose.msra.mxu0 0.0
    %1870 = vmatprep.subr.mxu0 0.0
    %1871 = vmatpush2.xpose.msra.mxu0 0.0
    %1872 = vmatprep.subr.mxu0 0.0
    %1873 = vmatpush2.xpose.msra.mxu0 0.0
    %1874 = vmatprep.subr.mxu0 0.0
    %1875 = vmatpush2.xpose.msra.mxu0 0.0
    %1876 = vmatprep.subr.mxu0 0.0
    %1877 = vmatpush2.xpose.msra.mxu0 0.0
    %1878 = vmatprep.subr.mxu0 0.0
    %1879 = vmatpush2.xpose.msra.mxu0 0.0
    %1880 = vmatprep.mubr.f32.mxu0 0.0
    %1881 = vmatmul.mubr.f32.gmra.mxu0 %v1812
    %v1882 = vpop.f32.mrf.mxu0
    %v1883 = vadd.f32 %v134, %v1882
    %v1884 = vpop.f32.mrf.mxu0
    %1885 = vdwg.mxu0
    %v1886 = vsel %vm213, %v1883, -inf
    %1887 = vmax.xlane.f32.xlu0 %v1886
    %v1888 = vpop.xlane.xlu0 %1887
    %v1889 = vsub.f32 %v1883, %v1888
    %v1890 = vmul.f32 %v1889, 1.442695
    %v1891 = vpow.pop %v1890
    %v1892 = vsel %vm213, %v1891, 0.0
    %1893 = vadd.xlane.f32.xlu0 %v1892
    %v1894 = vpop.xlane.xlu0 %1893
    %v1895 = vrcp.pop %v1894
    %v1896 = vmul.f32 %v1891, %v1895
    %1897 = vrot.lane.b32.xlu0 %v127, 80
    %v1898 = vpop.permute.xlu0 %1897
    %v1901 = vsel %vm213, %v1896, 0
    %1903 = vmatprep.subr.mxu0 0.0
    %1904 = vmatpush1.msra.mxu0 0.0
    %1905 = vmatprep.subr.mxu0 0.0
    %1906 = vmatpush1.msra.mxu0 0.0
    %1907 = vmatprep.subr.mxu0 0.0
    %1908 = vmatpush1.msra.mxu0 0.0
    %1909 = vmatprep.subr.mxu0 0.0
    %1910 = vmatpush1.msra.mxu0 0.0
    %1911 = vmatprep.subr.mxu0 0.0
    %1912 = vmatpush1.msra.mxu0 0.0
    %1913 = vmatprep.subr.mxu0 0.0
    %1914 = vmatpush1.msra.mxu0 0.0
    %1915 = vmatprep.subr.mxu0 0.0
    %1916 = vmatpush1.msra.mxu0 0.0
    %1917 = vmatprep.subr.mxu0 0.0
    %1918 = vmatpush1.msra.mxu0 0.0
    %1919 = vmatprep.subr.mxu0 0.0
    %1920 = vmatpush1.msra.mxu0 0.0
    %1921 = vmatprep.subr.mxu0 0.0
    %1922 = vmatpush1.msra.mxu0 0.0
    %1923 = vmatprep.subr.mxu0 0.0
    %1924 = vmatpush1.msra.mxu0 0.0
    %1925 = vmatprep.subr.mxu0 0.0
    %1926 = vmatpush1.msra.mxu0 0.0
    %1927 = vmatprep.subr.mxu0 0.0
    %1928 = vmatpush1.msra.mxu0 0.0
    %1929 = vmatprep.subr.mxu0 0.0
    %1930 = vmatpush1.msra.mxu0 0.0
    %1931 = vmatprep.subr.mxu0 0.0
    %1932 = vmatpush1.msra.mxu0 0.0
    %1933 = vmatprep.subr.mxu0 0.0
    %1934 = vmatpush1.msra.mxu0 %v1898
    %1935 = vmatprep.subr.mxu0 0.0
    %1936 = vmatpush2.msra.mxu0 0.0
    %1937 = vmatprep.subr.mxu0 0.0
    %1938 = vmatpush2.msra.mxu0 0.0
    %1939 = vmatprep.subr.mxu0 0.0
    %1940 = vmatpush2.msra.mxu0 0.0
    %1941 = vmatprep.subr.mxu0 0.0
    %1942 = vmatpush2.msra.mxu0 0.0
    %1943 = vmatprep.subr.mxu0 0.0
    %1944 = vmatpush2.msra.mxu0 0.0
    %1945 = vmatprep.subr.mxu0 0.0
    %1946 = vmatpush2.msra.mxu0 0.0
    %1947 = vmatprep.subr.mxu0 0.0
    %1948 = vmatpush2.msra.mxu0 0.0
    %1949 = vmatprep.subr.mxu0 0.0
    %1950 = vmatpush2.msra.mxu0 0.0
    %1951 = vmatprep.subr.mxu0 0.0
    %1952 = vmatpush2.msra.mxu0 0.0
    %1953 = vmatprep.subr.mxu0 0.0
    %1954 = vmatpush2.msra.mxu0 0.0
    %1955 = vmatprep.subr.mxu0 0.0
    %1956 = vmatpush2.msra.mxu0 0.0
    %1957 = vmatprep.subr.mxu0 0.0
    %1958 = vmatpush2.msra.mxu0 0.0
    %1959 = vmatprep.subr.mxu0 0.0
    %1960 = vmatpush2.msra.mxu0 0.0
    %1961 = vmatprep.subr.mxu0 0.0
    %1962 = vmatpush2.msra.mxu0 0.0
    %1963 = vmatprep.subr.mxu0 0.0
    %1964 = vmatpush2.msra.mxu0 0.0
    %1965 = vmatprep.subr.mxu0 0.0
    %1966 = vmatpush2.msra.mxu0 0.0
    %1967 = vmatprep.mubr.f32.mxu0 0.0
    %1968 = vmatmul.mubr.f32.gmra.mxu0 %v1901
    %v1969 = vpop.f32.mrf.mxu0
    %v1970 = vadd.f32 0.0, %v1969
    %v1971 = vpop.f32.mrf.mxu0
    %1972 = vdwg.mxu0
    %v1974 = vsel %vm138, %v1970, 0
    %1976 = vmatprep.subr.mxu0 0.0
    %1977 = vmatpush1.msra.mxu0 0.0
    %1978 = vmatprep.subr.mxu0 0.0
    %1979 = vmatpush1.msra.mxu0 0.0
    %1980 = vmatprep.subr.mxu0 0.0
    %1981 = vmatpush1.msra.mxu0 0.0
    %1982 = vmatprep.subr.mxu0 0.0
    %1983 = vmatpush1.msra.mxu0 0.0
    %1984 = vmatprep.subr.mxu0 0.0
    %1985 = vmatpush1.msra.mxu0 0.0
    %1986 = vmatprep.subr.mxu0 0.0
    %1987 = vmatpush1.msra.mxu0 0.0
    %1988 = vmatprep.subr.mxu0 0.0
    %1989 = vmatpush1.msra.mxu0 0.0
    %1990 = vmatprep.subr.mxu0 0.0
    %1991 = vmatpush1.msra.mxu0 0.0
    %1992 = vmatprep.subr.mxu0 0.0
    %1993 = vmatpush1.msra.mxu0 0.0
    %1994 = vmatprep.subr.mxu0 0.0
    %1995 = vmatpush1.msra.mxu0 0.0
    %1996 = vmatprep.subr.mxu0 0.0
    %1997 = vmatpush1.msra.mxu0 0.0
    %1998 = vmatprep.subr.mxu0 0.0
    %1999 = vmatpush1.msra.mxu0 0.0
    %2000 = vmatprep.subr.mxu0 0.0
    %2001 = vmatpush1.msra.mxu0 0.0
    %2002 = vmatprep.subr.mxu0 0.0
    %2003 = vmatpush1.msra.mxu0 0.0
    %2004 = vmatprep.subr.mxu0 0.0
    %2005 = vmatpush1.msra.mxu0 %v43
    %2006 = vmatprep.subr.mxu0 0.0
    %2007 = vmatpush1.msra.mxu0 %v42
    %2008 = vmatprep.subr.mxu0 0.0
    %2009 = vmatpush2.msra.mxu0 0.0
    %2010 = vmatprep.subr.mxu0 0.0
    %2011 = vmatpush2.msra.mxu0 0.0
    %2012 = vmatprep.subr.mxu0 0.0
    %2013 = vmatpush2.msra.mxu0 0.0
    %2014 = vmatprep.subr.mxu0 0.0
    %2015 = vmatpush2.msra.mxu0 0.0
    %2016 = vmatprep.subr.mxu0 0.0
    %2017 = vmatpush2.msra.mxu0 0.0
    %2018 = vmatprep.subr.mxu0 0.0
    %2019 = vmatpush2.msra.mxu0 0.0
    %2020 = vmatprep.subr.mxu0 0.0
    %2021 = vmatpush2.msra.mxu0 0.0
    %2022 = vmatprep.subr.mxu0 0.0
    %2023 = vmatpush2.msra.mxu0 0.0
    %2024 = vmatprep.subr.mxu0 0.0
    %2025 = vmatpush2.msra.mxu0 0.0
    %2026 = vmatprep.subr.mxu0 0.0
    %2027 = vmatpush2.msra.mxu0 0.0
    %2028 = vmatprep.subr.mxu0 0.0
    %2029 = vmatpush2.msra.mxu0 0.0
    %2030 = vmatprep.subr.mxu0 0.0
    %2031 = vmatpush2.msra.mxu0 0.0
    %2032 = vmatprep.subr.mxu0 0.0
    %2033 = vmatpush2.msra.mxu0 0.0
    %2034 = vmatprep.subr.mxu0 0.0
    %2035 = vmatpush2.msra.mxu0 0.0
    %2036 = vmatprep.subr.mxu0 0.0
    %2037 = vmatpush2.msra.mxu0 0.0
    %2038 = vmatprep.subr.mxu0 0.0
    %2039 = vmatpush2.msra.mxu0 0.0
    %2040 = vmatprep.mubr.f32.mxu0 0.0
    %2041 = vmatmul.mubr.f32.gmra.mxu0 %v1974
    %v2042 = vpop.f32.mrf.mxu0
    %v2043 = vadd.f32 0.0, %v2042
    %v2044 = vpop.f32.mrf.mxu0
    %2045 = vdwg.mxu0
    %v2046 = vadd.f32 %v1807, %v2043
    %v2047 = vadd.f32 %v2046, %v1092
    %2048 = vst.msk [vmem:[#allocation2 + $0x8] sm:$0xff] %vm45, %v2047
    // Predicated region
    $region18: #{multihead_forward.1} parent=1 // pred_check
      _
    $region19: #{multihead_forward.1} parent=1 // pred_check_branch
      %2050 = sbr.rel (0) target = $region21
    $region20: #{multihead_forward.1} parent=1 // pred_region
      %s2052 = ssub.s32 256, 256
      %2053 = vsyncadd [#allocation3], %s2052
      %s2054 = sshll.u32 [#allocation2], 4
      %s2055 = int_to_ptr.vmem [resolvable:$true] %s2054
      %2060 = dma.vmem_to_hbm [thread:$0]  %s2055, 256, %s4, [#allocation3], 128, 128, 8
    $region21: #{multihead_forward.1} parent=1 // pred_fallthru
      _
    // Predicated region
    $region22: #{multihead_forward.1} parent=1 // pred_check
      _
    $region23: #{multihead_forward.1} parent=1 // pred_check_branch
      %2062 = sbr.rel (0) target = $region25
    $region24: #{multihead_forward.1} parent=1 // pred_region
      %2063 = dma.done [#allocation3], 256
    $region25: #{multihead_forward.1} parent=1 // pred_fallthru
      _
    %2064 = vsyncpa [#allocation3], 1

</llo_original>
